<compile_context>
chip_gen: v6e
topology: v6e:2x2x1
jax: 0.10.0
libtpu: 0.0.40
codegen_flags: <defaults>
</compile_context>

<pallas_src>
import functools

import jax
import jax.numpy as jnp
from jax import lax
from jax.experimental import pallas as pl
from jax.experimental.pallas import tpu as pltpu

_LANES = 128


def _round_up(x, m):
    return ((x + m - 1) // m) * m


def _unigcn_fused_kernel(x_ref, h_ref, dv_ref, alpha_ref,
                         w1_ref, b1_ref, w2_ref, b2_ref,
                         o_ref, y_acc, ys_bf):
    # phase 0: layer-1 v2e | phase 1: layer-1 e2v + layer-2 theta + layer-2 v2e | phase 2: layer-2 e2v
    phase = pl.program_id(0)
    step = pl.program_id(1)      # N-row tile index

    # Phase boundary: the Y accumulated in the previous phase is complete.
    # Scale it by alpha_e = tilde_d_e^-1/2 / d_e in f32, stash a bf16 copy for the MXU,
    # then reset the accumulator for the next layer's v2e reduction.
    @pl.when(jnp.logical_and(phase >= 1, step == 0))
    def _():
        ys_bf[...] = (y_acc[...] * alpha_ref[...]).astype(jnp.bfloat16)

    @pl.when(jnp.logical_and(phase <= 1, step == 0))
    def _():
        y_acc[...] = jnp.zeros_like(y_acc)

    h_blk = h_ref[...]           # (tile_n, E_pad) bf16 — used by every phase

    # Keep the (revisited) output block defined in the non-final phases so only
    # well-defined data is ever written back; phase 2 overwrites it with the result.
    @pl.when(phase != 2)
    def _():
        o_ref[...] = jnp.zeros_like(o_ref)

    @pl.when(phase == 0)
    def _():
        # theta_1: X W1^T + b1  (bf16 MXU inputs, f32 accumulation, f32 bias)
        xw = jnp.dot(x_ref[...], w1_ref[...],
                     preferred_element_type=jnp.float32) + b1_ref[...]
        # un-normalized v2e: Y1 += H^T @ XW  (contract the vertex/sublane axis)
        y_acc[...] += lax.dot_general(
            h_blk, xw.astype(jnp.bfloat16),
            (((0,), (0,)), ((), ())),
            preferred_element_type=jnp.float32)

    @pl.when(phase == 1)
    def _():
        # layer-1 e2v: Z1 = relu(dv^-1/2 * (H @ (alpha_e * Y1)))
        z1 = jnp.dot(h_blk, ys_bf[...], preferred_element_type=jnp.float32)
        z1 = jnp.maximum(z1 * dv_ref[...], 0.0)
        # TODO(synk): dropout omitted (eval-mode => identity); use_bn=False => no BatchNorm.
        # layer-2 theta fused in: XW2 = Z1 W2^T + b2
        xw2 = jnp.dot(z1.astype(jnp.bfloat16), w2_ref[...],
                      preferred_element_type=jnp.float32) + b2_ref[...]
        # layer-2 un-normalized v2e
        y_acc[...] += lax.dot_general(
            h_blk, xw2.astype(jnp.bfloat16),
            (((0,), (0,)), ((), ())),
            preferred_element_type=jnp.float32)

    @pl.when(phase == 2)
    def _():
        # layer-2 e2v (is_last: no activation)
        z2 = jnp.dot(h_blk, ys_bf[...], preferred_element_type=jnp.float32)
        o_ref[...] = (z2 * dv_ref[...]).astype(o_ref.dtype)


@jax.jit
def unigcn_forward(x, h, params):
    w1, b1, w2, b2 = params
    n, c_in = x.shape
    e = h.shape[1]
    c_hid = w1.shape[0]
    c_cls = w2.shape[0]
    assert h.shape[0] == n and w1.shape[1] == c_in and w2.shape[1] == c_hid
    # TODO(synk): channel dims > 128 would need a channel grid axis; not needed here.
    assert max(c_in, c_hid, c_cls) <= _LANES

    # Degree normalizations (cheap XLA glue, kept in f32).
    h_f = h.astype(jnp.float32)
    d_v = jnp.sum(h_f, axis=1)                       # (N,)  vertex degrees
    d_e = jnp.sum(h_f, axis=0)                       # (E,)  hyperedge sizes
    tilde_d_e = (h_f.T @ d_v) / d_e                  # (E,)  mean vertex degree per edge
    alpha_e = (tilde_d_e ** -0.5) / d_e              # combined per-edge scale
    dv_isqrt = d_v ** -0.5                           # per-vertex scale

    # Tiling: N on the sublane axis (16-aligned for bf16), E and channels lane-dense.
    tile_n = 256 if n >= 256 else _round_up(n, 16)
    n_pad = _round_up(n, tile_n)
    e_pad = _round_up(e, _LANES)
    c_pad = _LANES

    # Zero-padded bf16 MXU operands; degree scalings stay f32.
    x_p = jnp.zeros((n_pad, c_pad), jnp.bfloat16).at[:n, :c_in].set(x.astype(jnp.bfloat16))
    h_p = jnp.zeros((n_pad, e_pad), jnp.bfloat16).at[:n, :e].set(h_f.astype(jnp.bfloat16))
    dv_p = jnp.zeros((n_pad, 1), jnp.float32).at[:n, 0].set(dv_isqrt)
    al_p = jnp.zeros((e_pad, 1), jnp.float32).at[:e, 0].set(alpha_e)
    w1_p = jnp.zeros((c_pad, c_pad), jnp.bfloat16).at[:c_in, :c_hid].set(w1.T.astype(jnp.bfloat16))
    b1_p = jnp.zeros((1, c_pad), jnp.float32).at[0, :c_hid].set(b1.astype(jnp.float32))
    w2_p = jnp.zeros((c_pad, c_pad), jnp.bfloat16).at[:c_hid, :c_cls].set(w2.T.astype(jnp.bfloat16))
    b2_p = jnp.zeros((1, c_pad), jnp.float32).at[0, :c_cls].set(b2.astype(jnp.float32))

    num_tiles = n_pad // tile_n
    grid = (3, num_tiles)

    row_tile = lambda p, i: (i, 0)   # streamed per N-row tile
    whole = lambda p, i: (0, 0)      # resident (weights, biases, alpha_e)

    in_specs = [
        pl.BlockSpec((tile_n, c_pad), row_tile),     # X
        pl.BlockSpec((tile_n, e_pad), row_tile),     # H (streamed once per phase)
        pl.BlockSpec((tile_n, 1), row_tile),         # d_v^-1/2
        pl.BlockSpec((e_pad, 1), whole),             # alpha_e
        pl.BlockSpec((c_pad, c_pad), whole),         # W1^T
        pl.BlockSpec((1, c_pad), whole),             # b1
        pl.BlockSpec((c_pad, c_pad), whole),         # W2^T
        pl.BlockSpec((1, c_pad), whole),             # b2
    ]
    out_spec = pl.BlockSpec((tile_n, c_pad), row_tile)

    flops = 2 * n_pad * c_pad * c_pad * 2 + 2 * n_pad * e_pad * c_pad * 4
    bytes_accessed = (3 * n_pad * e_pad * 2          # H streamed once per phase (bf16)
                      + 3 * n_pad * c_pad * 2        # X blocks (bf16)
                      + 3 * n_pad * c_pad * 4        # output writebacks (f32)
                      + 2 * c_pad * c_pad * 2        # weights
                      + 2 * c_pad * 4                # biases
                      + n_pad * 4 + e_pad * 4)       # degree vectors

    out_p = pl.pallas_call(
        _unigcn_fused_kernel,
        out_shape=jax.ShapeDtypeStruct((n_pad, c_pad), jnp.float32),
        grid_spec=pltpu.PrefetchScalarGridSpec(
            num_scalar_prefetch=0,
            grid=grid,
            in_specs=in_specs,
            out_specs=out_spec,
            scratch_shapes=[
                pltpu.VMEM((e_pad, c_pad), jnp.float32),   # Y accumulator (f32)
                pltpu.VMEM((e_pad, c_pad), jnp.bfloat16),  # alpha_e * Y (bf16 MXU operand)
            ],
        ),
        compiler_params=pltpu.CompilerParams(
            # phase axis is sequential; N-tile axis reduces into shared VMEM scratch,
            # so both stay "arbitrary".
            dimension_semantics=("arbitrary", "arbitrary"),
            vmem_limit_bytes=48 * 1024 * 1024,
        ),
        cost_estimate=pl.CostEstimate(
            flops=flops, transcendentals=0, bytes_accessed=bytes_accessed),
    )(x_p, h_p, dv_p, al_p, w1_p, b1_p, w2_p, b2_p)

    return out_p[:n, :c_cls]


def unigcn_reference(x, h, params):
    """Pure-JAX f32 reference for a sanity check."""
    w1, b1, w2, b2 = params
    h = h.astype(jnp.float32)
    d_v = jnp.sum(h, axis=1)
    d_e = jnp.sum(h, axis=0)
    tilde_d_e = (h.T @ d_v) / d_e
    a_v2e = h.T / d_e[:, None]                                           # (E, N)
    a_e2v = (d_v ** -0.5)[:, None] * h * (tilde_d_e ** -0.5)[None, :]    # (N, E)
    z = a_e2v @ (a_v2e @ (x @ w1.T + b1))
    z = jnp.maximum(z, 0.0)
    z = a_e2v @ (a_v2e @ (z @ w2.T + b2))
    return z


if __name__ == "__main__":
    key = jax.random.PRNGKey(0)
    k_x, k_h, k_w1, k_b1, k_w2, k_b2 = jax.random.split(key, 6)

    # Small, forward-consistent shapes.
    N, E = 16, 8            # vertices, hyperedges
    C_IN, C_HID, C_CLS = 8, 32, 4

    # Vertex feature matrix X: (N, C_in)
    x = jax.random.normal(k_x, (N, C_IN), dtype=jnp.float32)

    # Deterministic synthetic hypergraph incidence matrix H: (N, E), 0/1 entries.
    h = jax.random.bernoulli(k_h, p=0.3, shape=(N, E)).astype(jnp.float32)
    # Guarantee every hyperedge is non-empty and every vertex has degree >= 1.
    h = h.at[jnp.arange(E) % N, jnp.arange(E)].set(1.0)
    h = h.at[jnp.arange(N), jnp.arange(N) % E].set(1.0)

    # Deterministic parameter init (nn.Linear shapes: W (out, in), b (out,)).
    w1 = jax.random.normal(k_w1, (C_HID, C_IN), dtype=jnp.float32) * 0.1
    b1 = jax.random.normal(k_b1, (C_HID,), dtype=jnp.float32) * 0.01
    w2 = jax.random.normal(k_w2, (C_CLS, C_HID), dtype=jnp.float32) * 0.1
    b2 = jax.random.normal(k_b2, (C_CLS,), dtype=jnp.float32) * 0.01
    params = (w1, b1, w2, b2)

    out = unigcn_forward(x, h, params)
    out = jax.block_until_ready(out)

    ref = unigcn_reference(x, h, params)
    assert out.shape == (N, C_CLS)
    # bf16 MXU inputs with f32 accumulation => compare against the f32 reference with
    # a bf16-appropriate tolerance.
    assert jnp.allclose(out, ref, atol=3e-2, rtol=3e-2), "mismatch vs JAX reference"

    print("KERNEL_OK")
</pallas_src>

<mosaic_0001>
module attributes {stable_mosaic.version = 11 : i64} {
  func.func @_unigcn_fused_kernel(%arg0: i32, %arg1: i32, %arg2: memref<16x128xbf16, #tpu.memory_space<vmem>>, %arg3: memref<16x128xbf16, #tpu.memory_space<vmem>>, %arg4: memref<16x1xf32, #tpu.memory_space<vmem>>, %arg5: memref<128x1xf32, #tpu.memory_space<vmem>>, %arg6: memref<128x128xbf16, #tpu.memory_space<vmem>>, %arg7: memref<1x128xf32, #tpu.memory_space<vmem>>, %arg8: memref<128x128xbf16, #tpu.memory_space<vmem>>, %arg9: memref<1x128xf32, #tpu.memory_space<vmem>>, %arg10: memref<16x128xf32, #tpu.memory_space<vmem>>, %arg11: memref<128x128xf32, #tpu.memory_space<vmem>>, %arg12: memref<128x128xbf16, #tpu.memory_space<vmem>>) attributes {dimension_semantics = [#tpu.dimension_semantics<arbitrary>, #tpu.dimension_semantics<arbitrary>], iteration_bounds = array<i64: 3, 1>, scalar_prefetch = 0 : i64, scratch_operands = 2 : i64, tpu.core_type = #tpu.core_type<tc>, window_params = [{transform_indices = @transform_0, window_bounds = array<i64: 16, 128>}, {transform_indices = @transform_1, window_bounds = array<i64: 16, 128>}, {transform_indices = @transform_2, window_bounds = array<i64: 16, 1>}, {pipeline_mode = #tpu.pipeline_mode<synchronous>, transform_indices = @transform_3, window_bounds = array<i64: 128, 1>}, {pipeline_mode = #tpu.pipeline_mode<synchronous>, transform_indices = @transform_4, window_bounds = array<i64: 128, 128>}, {pipeline_mode = #tpu.pipeline_mode<synchronous>, transform_indices = @transform_5, window_bounds = array<i64: 1, 128>}, {pipeline_mode = #tpu.pipeline_mode<synchronous>, transform_indices = @transform_6, window_bounds = array<i64: 128, 128>}, {pipeline_mode = #tpu.pipeline_mode<synchronous>, transform_indices = @transform_7, window_bounds = array<i64: 1, 128>}, {transform_indices = @transform_8, window_bounds = array<i64: 16, 128>}]} {
    %c1_i32 = arith.constant 1 : i32
    %0 = arith.cmpi sge, %arg0, %c1_i32 : i32
    %c0_i32 = arith.constant 0 : i32
    %1 = arith.cmpi eq, %arg1, %c0_i32 : i32
    %2 = arith.andi %0, %1 : i1
    %3 = arith.extui %2 : i1 to i32
    %c0_i32_0 = arith.constant 0 : i32
    %4 = arith.cmpi ne, %3, %c0_i32_0 : i32
    scf.if %4 {
      %c0_12 = arith.constant 0 : index
      %c0_13 = arith.constant 0 : index
      %23 = vector.load %arg11[%c0_12, %c0_13] : memref<128x128xf32, #tpu.memory_space<vmem>>, vector<128x128xf32>
      %c0_14 = arith.constant 0 : index
      %c0_15 = arith.constant 0 : index
      %24 = vector.load %arg5[%c0_14, %c0_15] : memref<128x1xf32, #tpu.memory_space<vmem>>, vector<128x1xf32>
      %25 = vector.broadcast %24 : vector<128x1xf32> to vector<128x128xf32>
      %26 = arith.mulf %23, %25 : vector<128x128xf32>
      %27 = arith.truncf %26 : vector<128x128xf32> to vector<128x128xbf16>
      %c0_16 = arith.constant 0 : index
      %c0_17 = arith.constant 0 : index
      %28 = vector.load %arg12[%c0_16, %c0_17] : memref<128x128xbf16, #tpu.memory_space<vmem>>, vector<128x128xbf16>
      tpu.vector_store %arg12[%c0_16, %c0_17], %27 {strides = array<i32>} : memref<128x128xbf16, #tpu.memory_space<vmem>>, vector<128x128xbf16>,
    } else {
    }
    %c1_i32_1 = arith.constant 1 : i32
    %5 = arith.cmpi sle, %arg0, %c1_i32_1 : i32
    %c0_i32_2 = arith.constant 0 : i32
    %6 = arith.cmpi eq, %arg1, %c0_i32_2 : i32
    %7 = arith.andi %5, %6 : i1
    %8 = arith.extui %7 : i1 to i32
    %c0_i32_3 = arith.constant 0 : i32
    %9 = arith.cmpi ne, %8, %c0_i32_3 : i32
    scf.if %9 {
      %cst = arith.constant 0.000000e+00 : f32
      %23 = vector.broadcast %cst : f32 to vector<128x128xf32>
      %c0_12 = arith.constant 0 : index
      %c0_13 = arith.constant 0 : index
      %24 = vector.load %arg11[%c0_12, %c0_13] : memref<128x128xf32, #tpu.memory_space<vmem>>, vector<128x128xf32>
      tpu.vector_store %arg11[%c0_12, %c0_13], %23 {strides = array<i32>} : memref<128x128xf32, #tpu.memory_space<vmem>>, vector<128x128xf32>,
    } else {
    }
    %c0 = arith.constant 0 : index
    %c0_4 = arith.constant 0 : index
    %10 = vector.load %arg3[%c0, %c0_4] : memref<16x128xbf16, #tpu.memory_space<vmem>>, vector<16x128xbf16>
    %c2_i32 = arith.constant 2 : i32
    %11 = arith.cmpi ne, %arg0, %c2_i32 : i32
    %12 = arith.extui %11 : i1 to i32
    %c0_i32_5 = arith.constant 0 : i32
    %13 = arith.cmpi ne, %12, %c0_i32_5 : i32
    scf.if %13 {
      %cst = arith.constant 0.000000e+00 : f32
      %23 = vector.broadcast %cst : f32 to vector<16x128xf32>
      %c0_12 = arith.constant 0 : index
      %c0_13 = arith.constant 0 : index
      %24 = vector.load %arg10[%c0_12, %c0_13] : memref<16x128xf32, #tpu.memory_space<vmem>>, vector<16x128xf32>
      tpu.vector_store %arg10[%c0_12, %c0_13], %23 {strides = array<i32>} : memref<16x128xf32, #tpu.memory_space<vmem>>, vector<16x128xf32>,
    } else {
    }
    %c0_i32_6 = arith.constant 0 : i32
    %14 = arith.cmpi eq, %arg0, %c0_i32_6 : i32
    %15 = arith.extui %14 : i1 to i32
    %c0_i32_7 = arith.constant 0 : i32
    %16 = arith.cmpi ne, %15, %c0_i32_7 : i32
    scf.if %16 {
      %c0_12 = arith.constant 0 : index
      %c0_13 = arith.constant 0 : index
      %23 = vector.load %arg2[%c0_12, %c0_13] : memref<16x128xbf16, #tpu.memory_space<vmem>>, vector<16x128xbf16>
      %c0_14 = arith.constant 0 : index
      %c0_15 = arith.constant 0 : index
      %24 = vector.load %arg6[%c0_14, %c0_15] : memref<128x128xbf16, #tpu.memory_space<vmem>>, vector<128x128xbf16>
      %cst = arith.constant dense<0.000000e+00> : vector<16x128xf32>
      %25 = tpu.matmul %23, %24, %cst {dimension_numbers = #tpu.dot_dimension_numbers<[1], [0], [0], [1], [0, 0, 1, 1], [], []>} : vector<16x128xbf16>, vector<128x128xbf16>, vector<16x128xf32> -> vector<16x128xf32>
      %c0_16 = arith.constant 0 : index
      %c0_17 = arith.constant 0 : index
      %26 = vector.load %arg7[%c0_16, %c0_17] : memref<1x128xf32, #tpu.memory_space<vmem>>, vector<1x128xf32>
      %27 = vector.broadcast %26 : vector<1x128xf32> to vector<16x128xf32>
      %28 = arith.addf %25, %27 : vector<16x128xf32>
      %c0_18 = arith.constant 0 : index
      %c0_19 = arith.constant 0 : index
      %29 = vector.load %arg11[%c0_18, %c0_19] : memref<128x128xf32, #tpu.memory_space<vmem>>, vector<128x128xf32>
      %30 = arith.truncf %28 : vector<16x128xf32> to vector<16x128xbf16>
      %cst_20 = arith.constant dense<0.000000e+00> : vector<128x128xf32>
      %31 = tpu.matmul %10, %30, %cst_20 {dimension_numbers = #tpu.dot_dimension_numbers<[0], [0], [1], [1], [0, 1, 1, 1], [], []>} : vector<16x128xbf16>, vector<16x128xbf16>, vector<128x128xf32> -> vector<128x128xf32>
      %32 = arith.addf %29, %31 : vector<128x128xf32>
      %c0_21 = arith.constant 0 : index
      %c0_22 = arith.constant 0 : index
      %33 = vector.load %arg11[%c0_21, %c0_22] : memref<128x128xf32, #tpu.memory_space<vmem>>, vector<128x128xf32>
      tpu.vector_store %arg11[%c0_21, %c0_22], %32 {strides = array<i32>} : memref<128x128xf32, #tpu.memory_space<vmem>>, vector<128x128xf32>,
    } else {
    }
    %c1_i32_8 = arith.constant 1 : i32
    %17 = arith.cmpi eq, %arg0, %c1_i32_8 : i32
    %18 = arith.extui %17 : i1 to i32
    %c0_i32_9 = arith.constant 0 : i32
    %19 = arith.cmpi ne, %18, %c0_i32_9 : i32
    scf.if %19 {
      %c0_12 = arith.constant 0 : index
      %c0_13 = arith.constant 0 : index
      %23 = vector.load %arg12[%c0_12, %c0_13] : memref<128x128xbf16, #tpu.memory_space<vmem>>, vector<128x128xbf16>
      %cst = arith.constant dense<0.000000e+00> : vector<16x128xf32>
      %24 = tpu.matmul %10, %23, %cst {dimension_numbers = #tpu.dot_dimension_numbers<[1], [0], [0], [1], [0, 0, 1, 1], [], []>} : vector<16x128xbf16>, vector<128x128xbf16>, vector<16x128xf32> -> vector<16x128xf32>
      %c0_14 = arith.constant 0 : index
      %c0_15 = arith.constant 0 : index
      %25 = vector.load %arg4[%c0_14, %c0_15] : memref<16x1xf32, #tpu.memory_space<vmem>>, vector<16x1xf32>
      %26 = vector.broadcast %25 : vector<16x1xf32> to vector<16x128xf32>
      %27 = arith.mulf %24, %26 : vector<16x128xf32>
      %cst_16 = arith.constant 0.000000e+00 : f32
      %28 = vector.broadcast %cst_16 : f32 to vector<16x128xf32>
      %29 = arith.maximumf %27, %28 : vector<16x128xf32>
      %30 = arith.truncf %29 : vector<16x128xf32> to vector<16x128xbf16>
      %c0_17 = arith.constant 0 : index
      %c0_18 = arith.constant 0 : index
      %31 = vector.load %arg8[%c0_17, %c0_18] : memref<128x128xbf16, #tpu.memory_space<vmem>>, vector<128x128xbf16>
      %cst_19 = arith.constant dense<0.000000e+00> : vector<16x128xf32>
      %32 = tpu.matmul %30, %31, %cst_19 {dimension_numbers = #tpu.dot_dimension_numbers<[1], [0], [0], [1], [0, 0, 1, 1], [], []>} : vector<16x128xbf16>, vector<128x128xbf16>, vector<16x128xf32> -> vector<16x128xf32>
      %c0_20 = arith.constant 0 : index
      %c0_21 = arith.constant 0 : index
      %33 = vector.load %arg9[%c0_20, %c0_21] : memref<1x128xf32, #tpu.memory_space<vmem>>, vector<1x128xf32>
      %34 = vector.broadcast %33 : vector<1x128xf32> to vector<16x128xf32>
      %35 = arith.addf %32, %34 : vector<16x128xf32>
      %c0_22 = arith.constant 0 : index
      %c0_23 = arith.constant 0 : index
      %36 = vector.load %arg11[%c0_22, %c0_23] : memref<128x128xf32, #tpu.memory_space<vmem>>, vector<128x128xf32>
      %37 = arith.truncf %35 : vector<16x128xf32> to vector<16x128xbf16>
      %cst_24 = arith.constant dense<0.000000e+00> : vector<128x128xf32>
      %38 = tpu.matmul %10, %37, %cst_24 {dimension_numbers = #tpu.dot_dimension_numbers<[0], [0], [1], [1], [0, 1, 1, 1], [], []>} : vector<16x128xbf16>, vector<16x128xbf16>, vector<128x128xf32> -> vector<128x128xf32>
      %39 = arith.addf %36, %38 : vector<128x128xf32>
      %c0_25 = arith.constant 0 : index
      %c0_26 = arith.constant 0 : index
      %40 = vector.load %arg11[%c0_25, %c0_26] : memref<128x128xf32, #tpu.memory_space<vmem>>, vector<128x128xf32>
      tpu.vector_store %arg11[%c0_25, %c0_26], %39 {strides = array<i32>} : memref<128x128xf32, #tpu.memory_space<vmem>>, vector<128x128xf32>,
    } else {
    }
    %c2_i32_10 = arith.constant 2 : i32
    %20 = arith.cmpi eq, %arg0, %c2_i32_10 : i32
    %21 = arith.extui %20 : i1 to i32
    %c0_i32_11 = arith.constant 0 : i32
    %22 = arith.cmpi ne, %21, %c0_i32_11 : i32
    scf.if %22 {
      %c0_12 = arith.constant 0 : index
      %c0_13 = arith.constant 0 : index
      %23 = vector.load %arg12[%c0_12, %c0_13] : memref<128x128xbf16, #tpu.memory_space<vmem>>, vector<128x128xbf16>
      %cst = arith.constant dense<0.000000e+00> : vector<16x128xf32>
      %24 = tpu.matmul %10, %23, %cst {dimension_numbers = #tpu.dot_dimension_numbers<[1], [0], [0], [1], [0, 0, 1, 1], [], []>} : vector<16x128xbf16>, vector<128x128xbf16>, vector<16x128xf32> -> vector<16x128xf32>
      %c0_14 = arith.constant 0 : index
      %c0_15 = arith.constant 0 : index
      %25 = vector.load %arg4[%c0_14, %c0_15] : memref<16x1xf32, #tpu.memory_space<vmem>>, vector<16x1xf32>
      %26 = vector.broadcast %25 : vector<16x1xf32> to vector<16x128xf32>
      %27 = arith.mulf %24, %26 : vector<16x128xf32>
      %c0_16 = arith.constant 0 : index
      %c0_17 = arith.constant 0 : index
      %28 = vector.load %arg10[%c0_16, %c0_17] : memref<16x128xf32, #tpu.memory_space<vmem>>, vector<16x128xf32>
      tpu.vector_store %arg10[%c0_16, %c0_17], %27 {strides = array<i32>} : memref<16x128xf32, #tpu.memory_space<vmem>>, vector<16x128xf32>,
    } else {
    }
    return
  }
  func.func @transform_0(%arg0: i32, %arg1: i32) -> (i32, i32) {
    %c0_i32 = arith.constant 0 : i32
    %c0_i32_0 = arith.constant 0 : i32
    return %arg1, %c0_i32 : i32, i32
  }
  func.func @transform_1(%arg0: i32, %arg1: i32) -> (i32, i32) {
    %c0_i32 = arith.constant 0 : i32
    %c0_i32_0 = arith.constant 0 : i32
    return %arg1, %c0_i32 : i32, i32
  }
  func.func @transform_2(%arg0: i32, %arg1: i32) -> (i32, i32) {
    %c0_i32 = arith.constant 0 : i32
    %c0_i32_0 = arith.constant 0 : i32
    return %arg1, %c0_i32 : i32, i32
  }
  func.func @transform_3(%arg0: i32, %arg1: i32) -> (i32, i32) {
    %c0_i32 = arith.constant 0 : i32
    %c0_i32_0 = arith.constant 0 : i32
    %c0_i32_1 = arith.constant 0 : i32
    return %c0_i32, %c0_i32_0 : i32, i32
  }
  func.func @transform_4(%arg0: i32, %arg1: i32) -> (i32, i32) {
    %c0_i32 = arith.constant 0 : i32
    %c0_i32_0 = arith.constant 0 : i32
    %c0_i32_1 = arith.constant 0 : i32
    return %c0_i32, %c0_i32_0 : i32, i32
  }
  func.func @transform_5(%arg0: i32, %arg1: i32) -> (i32, i32) {
    %c0_i32 = arith.constant 0 : i32
    %c0_i32_0 = arith.constant 0 : i32
    %c0_i32_1 = arith.constant 0 : i32
    return %c0_i32, %c0_i32_0 : i32, i32
  }
  func.func @transform_6(%arg0: i32, %arg1: i32) -> (i32, i32) {
    %c0_i32 = arith.constant 0 : i32
    %c0_i32_0 = arith.constant 0 : i32
    %c0_i32_1 = arith.constant 0 : i32
    return %c0_i32, %c0_i32_0 : i32, i32
  }
  func.func @transform_7(%arg0: i32, %arg1: i32) -> (i32, i32) {
    %c0_i32 = arith.constant 0 : i32
    %c0_i32_0 = arith.constant 0 : i32
    %c0_i32_1 = arith.constant 0 : i32
    return %c0_i32, %c0_i32_0 : i32, i32
  }
  func.func @transform_8(%arg0: i32, %arg1: i32) -> (i32, i32) {
    %c0_i32 = arith.constant 0 : i32
    %c0_i32_0 = arith.constant 0 : i32
    return %arg1, %c0_i32 : i32, i32
  }
}

</mosaic_0001>

<llo_original>
// kernel: unigcn_forward.1
$region0: #{unigcn_forward.1}
  #allocation0 [shape = 'u32[]', space=smem, size = 0x4, offset = 0x4, fixed_abs, tag = 'smem constant byte address 0x4 - core index']
  #allocation1 [shape = 'u32[144,128]{1,0:T(1,128)}', space=vmem, size = 0x12000, scoped, tag = 'internal scratch']
  #allocation2 [shape = 'f32[128,128]{1,0:T(8,128)}', space=vmem, size = 0x10000, scoped, tag = 'scratch operand']
  #allocation3 [shape = 'bf16[128,128]{1,0:T(8,128)(2,1)}', space=vmem, size = 0x8000, scoped, tag = 'scratch operand']
  %s0 = inlined_call_operand.vmem [shape: bf16[16,128], index: 0, kind: input, shape index: {}]
  %s1 = inlined_call_operand.vmem [shape: bf16[16,128], index: 1, kind: input, shape index: {}]
  %s2 = inlined_call_operand.vmem [shape: f32[16,1], index: 2, kind: input, shape index: {}]
  %s3 = inlined_call_operand.vmem [shape: f32[128,1], index: 3, kind: input, shape index: {}]
  %s4 = inlined_call_operand.vmem [shape: bf16[128,128], index: 4, kind: input, shape index: {}]
  %s5 = inlined_call_operand.vmem [shape: f32[1,128], index: 5, kind: input, shape index: {}]
  %s6 = inlined_call_operand.vmem [shape: bf16[128,128], index: 6, kind: input, shape index: {}]
  %s7 = inlined_call_operand.vmem [shape: f32[1,128], index: 7, kind: input, shape index: {}]
  %s8 = inlined_call_operand.vmem [shape: f32[16,128], index: 8, kind: output, shape index: {}]
  %s9 = sld [smem:[#allocation0]]
  $region89: #{unigcn_forward.1} parent=0
    _
  %s11 = ssub.s32 1, %s9
  %s12 = scalar_select 0, %s11, %s9
  loop: start=0, step=1, limit=5
  $region2: #{unigcn_forward.1} parent=0 // loop_pre_header
    _
  $region3: #{unigcn_forward.1} parent=0 // loop_header
    %s14 = sphi 0, %s18
    %p15 = scmp.ge.s32.totalorder %s14, 5
    %s21 = sphi 0, %s33
    %s22 = sphi 0, %s29
    %s23 = sphi 0, %s21
    %s24 = sphi 0, %s22
    %s25 = sphi 0, %s23
    %s26 = sphi 0, %s24
    %s36 = sphi 0, %s38
    %s39 = sphi 0, %s36
    %s40 = sphi 0, %s39
    %s56 = sphi 0, %s40
    %s62 = sphi 0, %s64
    %s65 = sphi 0, %s62
    %s66 = sphi 0, %s65
    %s82 = sphi 0, %s66
    %s88 = sphi 0, %s90
    %s91 = sphi 0, %s88
    %s92 = sphi 0, %s91
    %s108 = sphi 0, %s92
    %s112 = sphi 0, %s112
    %s114 = sphi 0, %s112
    %s115 = sphi 0, %s114
    %s129 = sphi 0, %s115
    %s133 = sphi 0, %s133
    %s135 = sphi 0, %s133
    %s136 = sphi 0, %s135
    %s150 = sphi 0, %s136
    %s154 = sphi 0, %s154
    %s156 = sphi 0, %s154
    %s157 = sphi 0, %s156
    %s171 = sphi 0, %s157
    %s175 = sphi 0, %s175
    %s177 = sphi 0, %s175
    %s178 = sphi 0, %s177
    %s192 = sphi 0, %s178
    %s196 = sphi 0, %s196
    %s198 = sphi 0, %s196
    %s199 = sphi 0, %s198
    %s213 = sphi 0, %s199
    %s219 = sphi 0, %s221
    %s222 = sphi 0, %s219
    %s223 = sphi 0, %s222
    %s239 = sphi 0, %s223
  $region4: #{unigcn_forward.1} parent=0 // loop_header_branch
    %17 = sbr.rel (%p15) target = $region8
  $region5: #{unigcn_forward.1} parent=0 // loop_body
    %s19 = ssub.s32 %s14, 1
    %s20 = ssub.s32 %s14, 2
    %s27 = sadd.s32 1, %s22
    %p28 = scmp.ge.s32.totalorder %s27, 1
    %s29 = scalar_select %p28, 0, %s27
    %s30 = sadd.s32 1, %s21
    %s31 = scalar_select %p28, %s30, %s21
    %p32 = scmp.ge.s32.totalorder %s31, 3
    %s33 = scalar_select %p32, 0, %s31
    %s34 = ssub.s32 %s22, %s29
    %p35 = scmp.eq.s32.totalorder %s34, 0
    %s37 = sadd.s32 %s36, 1
    %s38 = scalar_select %p35, %s36, %s37
    %p41 = pneg %p35
    %p42 = scmp.eq.s32.totalorder %s14, 2
    %p43 = por %p41, %p42
    %p44 = scmp.ne.s32.totalorder %s36, %s39
    %p45 = scmp.eq.s32.totalorder %s14, 0
    %p46 = por %p44, %p45
    %p47 = scmp.ne.s32.totalorder %s36, %s39
    %p48 = scmp.eq.s32.totalorder %s19, 2
    %p49 = por %p47, %p48
    %p50 = scmp.ne.s32.totalorder %s39, %s40
    %p51 = scmp.eq.s32.totalorder %s19, 0
    %p52 = por %p50, %p51
    %p53 = scmp.ne.s32.totalorder %s39, %s40
    %p54 = scmp.eq.s32.totalorder %s20, 2
    %p55 = por %p53, %p54
    %p57 = scmp.ne.s32.totalorder %s40, %s56
    %p58 = scmp.eq.s32.totalorder %s20, 0
    %p59 = por %p57, %p58
    %s60 = ssub.s32 %s22, %s29
    %p61 = scmp.eq.s32.totalorder %s60, 0
    %s63 = sadd.s32 %s62, 1
    %s64 = scalar_select %p61, %s62, %s63
    %p67 = pneg %p61
    %p68 = scmp.eq.s32.totalorder %s14, 2
    %p69 = por %p67, %p68
    %p70 = scmp.ne.s32.totalorder %s62, %s65
    %p71 = scmp.eq.s32.totalorder %s14, 0
    %p72 = por %p70, %p71
    %p73 = scmp.ne.s32.totalorder %s62, %s65
    %p74 = scmp.eq.s32.totalorder %s19, 2
    %p75 = por %p73, %p74
    %p76 = scmp.ne.s32.totalorder %s65, %s66
    %p77 = scmp.eq.s32.totalorder %s19, 0
    %p78 = por %p76, %p77
    %p79 = scmp.ne.s32.totalorder %s65, %s66
    %p80 = scmp.eq.s32.totalorder %s20, 2
    %p81 = por %p79, %p80
    %p83 = scmp.ne.s32.totalorder %s66, %s82
    %p84 = scmp.eq.s32.totalorder %s20, 0
    %p85 = por %p83, %p84
    %s86 = ssub.s32 %s22, %s29
    %p87 = scmp.eq.s32.totalorder %s86, 0
    %s89 = sadd.s32 %s88, 1
    %s90 = scalar_select %p87, %s88, %s89
    %p93 = pneg %p87
    %p94 = scmp.eq.s32.totalorder %s14, 2
    %p95 = por %p93, %p94
    %p96 = scmp.ne.s32.totalorder %s88, %s91
    %p97 = scmp.eq.s32.totalorder %s14, 0
    %p98 = por %p96, %p97
    %p99 = scmp.ne.s32.totalorder %s88, %s91
    %p100 = scmp.eq.s32.totalorder %s19, 2
    %p101 = por %p99, %p100
    %p102 = scmp.ne.s32.totalorder %s91, %s92
    %p103 = scmp.eq.s32.totalorder %s19, 0
    %p104 = por %p102, %p103
    %p105 = scmp.ne.s32.totalorder %s91, %s92
    %p106 = scmp.eq.s32.totalorder %s20, 2
    %p107 = por %p105, %p106
    %p109 = scmp.ne.s32.totalorder %s92, %s108
    %p110 = scmp.eq.s32.totalorder %s20, 0
    %p111 = por %p109, %p110
    %s113 = sadd.s32 %s112, 1
    %p116 = scmp.eq.s32.totalorder %s14, 2
    %p117 = scmp.ne.s32.totalorder %s112, %s114
    %p118 = scmp.eq.s32.totalorder %s14, 0
    %p119 = por %p117, %p118
    %p120 = scmp.ne.s32.totalorder %s112, %s114
    %p121 = scmp.eq.s32.totalorder %s19, 2
    %p122 = por %p120, %p121
    %p123 = scmp.ne.s32.totalorder %s114, %s115
    %p124 = scmp.eq.s32.totalorder %s19, 0
    %p125 = por %p123, %p124
    %p126 = scmp.ne.s32.totalorder %s114, %s115
    %p127 = scmp.eq.s32.totalorder %s20, 2
    %p128 = por %p126, %p127
    %p130 = scmp.ne.s32.totalorder %s115, %s129
    %p131 = scmp.eq.s32.totalorder %s20, 0
    %p132 = por %p130, %p131
    %s134 = sadd.s32 %s133, 1
    %p137 = scmp.eq.s32.totalorder %s14, 2
    %p138 = scmp.ne.s32.totalorder %s133, %s135
    %p139 = scmp.eq.s32.totalorder %s14, 0
    %p140 = por %p138, %p139
    %p141 = scmp.ne.s32.totalorder %s133, %s135
    %p142 = scmp.eq.s32.totalorder %s19, 2
    %p143 = por %p141, %p142
    %p144 = scmp.ne.s32.totalorder %s135, %s136
    %p145 = scmp.eq.s32.totalorder %s19, 0
    %p146 = por %p144, %p145
    %p147 = scmp.ne.s32.totalorder %s135, %s136
    %p148 = scmp.eq.s32.totalorder %s20, 2
    %p149 = por %p147, %p148
    %p151 = scmp.ne.s32.totalorder %s136, %s150
    %p152 = scmp.eq.s32.totalorder %s20, 0
    %p153 = por %p151, %p152
    %s155 = sadd.s32 %s154, 1
    %p158 = scmp.eq.s32.totalorder %s14, 2
    %p159 = scmp.ne.s32.totalorder %s154, %s156
    %p160 = scmp.eq.s32.totalorder %s14, 0
    %p161 = por %p159, %p160
    %p162 = scmp.ne.s32.totalorder %s154, %s156
    %p163 = scmp.eq.s32.totalorder %s19, 2
    %p164 = por %p162, %p163
    %p165 = scmp.ne.s32.totalorder %s156, %s157
    %p166 = scmp.eq.s32.totalorder %s19, 0
    %p167 = por %p165, %p166
    %p168 = scmp.ne.s32.totalorder %s156, %s157
    %p169 = scmp.eq.s32.totalorder %s20, 2
    %p170 = por %p168, %p169
    %p172 = scmp.ne.s32.totalorder %s157, %s171
    %p173 = scmp.eq.s32.totalorder %s20, 0
    %p174 = por %p172, %p173
    %s176 = sadd.s32 %s175, 1
    %p179 = scmp.eq.s32.totalorder %s14, 2
    %p180 = scmp.ne.s32.totalorder %s175, %s177
    %p181 = scmp.eq.s32.totalorder %s14, 0
    %p182 = por %p180, %p181
    %p183 = scmp.ne.s32.totalorder %s175, %s177
    %p184 = scmp.eq.s32.totalorder %s19, 2
    %p185 = por %p183, %p184
    %p186 = scmp.ne.s32.totalorder %s177, %s178
    %p187 = scmp.eq.s32.totalorder %s19, 0
    %p188 = por %p186, %p187
    %p189 = scmp.ne.s32.totalorder %s177, %s178
    %p190 = scmp.eq.s32.totalorder %s20, 2
    %p191 = por %p189, %p190
    %p193 = scmp.ne.s32.totalorder %s178, %s192
    %p194 = scmp.eq.s32.totalorder %s20, 0
    %p195 = por %p193, %p194
    %s197 = sadd.s32 %s196, 1
    %p200 = scmp.eq.s32.totalorder %s14, 2
    %p201 = scmp.ne.s32.totalorder %s196, %s198
    %p202 = scmp.eq.s32.totalorder %s14, 0
    %p203 = por %p201, %p202
    %p204 = scmp.ne.s32.totalorder %s196, %s198
    %p205 = scmp.eq.s32.totalorder %s19, 2
    %p206 = por %p204, %p205
    %p207 = scmp.ne.s32.totalorder %s198, %s199
    %p208 = scmp.eq.s32.totalorder %s19, 0
    %p209 = por %p207, %p208
    %p210 = scmp.ne.s32.totalorder %s198, %s199
    %p211 = scmp.eq.s32.totalorder %s20, 2
    %p212 = por %p210, %p211
    %p214 = scmp.ne.s32.totalorder %s199, %s213
    %p215 = scmp.eq.s32.totalorder %s20, 0
    %p216 = por %p214, %p215
    %s217 = ssub.s32 %s22, %s29
    %p218 = scmp.eq.s32.totalorder %s217, 0
    %s220 = sadd.s32 %s219, 1
    %s221 = scalar_select %p218, %s219, %s220
    %p224 = pneg %p218
    %p225 = scmp.eq.s32.totalorder %s14, 2
    %p226 = por %p224, %p225
    %p227 = scmp.ne.s32.totalorder %s219, %s222
    %p228 = scmp.eq.s32.totalorder %s14, 0
    %p229 = por %p227, %p228
    %p230 = scmp.ne.s32.totalorder %s219, %s222
    %p231 = scmp.eq.s32.totalorder %s19, 2
    %p232 = por %p230, %p231
    %p233 = scmp.ne.s32.totalorder %s222, %s223
    %p234 = scmp.eq.s32.totalorder %s19, 0
    %p235 = por %p233, %p234
    %p236 = scmp.ne.s32.totalorder %s222, %s223
    %p237 = scmp.eq.s32.totalorder %s20, 2
    %p238 = por %p236, %p237
    %p240 = scmp.ne.s32.totalorder %s223, %s239
    %p241 = scmp.eq.s32.totalorder %s20, 0
    %p242 = por %p240, %p241
    %p243 = scmp.le.s32.totalorder 1, %s14
    %p244 = scmp.lt.s32.totalorder %s14, 4
    %p245 = pnand %p243, %p244
    %p246 = pneg %p245
    // Predicated region
    $region9: #{unigcn_forward.1} parent=5 // pred_check
      _
    $region10: #{unigcn_forward.1} parent=5 // pred_check_branch
      %248 = sbr.rel (%p245) target = $region12
    $region11: #{unigcn_forward.1} parent=5 // pred_region
      %s249 = ssub.s32 %s14, 1
      // Predicated region
      $region13: #{unigcn_forward.1} parent=11 // pred_check
        %p250 = pneg %p52
      $region14: #{unigcn_forward.1} parent=11 // pred_check_branch
        %252 = sbr.rel (%p250) target = $region16
      $region15: #{unigcn_forward.1} parent=11 // pred_region
        %s253 = smul.u32 2, %s24
        %p254 = scmp.lt.s32.totalorder %s253, 1
        %s255 = scalar_select %p254, %s253, 1
        %s256 = smul.addr %s255, 4
        %s257 = scalar_lea.vmem %s0, %s256
        %s258 = smul.u32 2, %s24
      $region16: #{unigcn_forward.1} parent=11 // pred_fallthru
        _
      // Predicated region
      $region17: #{unigcn_forward.1} parent=11 // pred_check
        %p259 = pneg %p78
      $region18: #{unigcn_forward.1} parent=11 // pred_check_branch
        %261 = sbr.rel (%p259) target = $region20
      $region19: #{unigcn_forward.1} parent=11 // pred_region
        %s262 = smul.u32 2, %s24
        %p263 = scmp.lt.s32.totalorder %s262, 1
        %s264 = scalar_select %p263, %s262, 1
        %s265 = smul.addr %s264, 4
        %s266 = scalar_lea.vmem %s1, %s265
        %s267 = smul.u32 2, %s24
      $region20: #{unigcn_forward.1} parent=11 // pred_fallthru
        _
      // Predicated region
      $region21: #{unigcn_forward.1} parent=11 // pred_check
        %p268 = pneg %p104
      $region22: #{unigcn_forward.1} parent=11 // pred_check_branch
        %270 = sbr.rel (%p268) target = $region24
      $region23: #{unigcn_forward.1} parent=11 // pred_region
        %s271 = smul.u32 2, %s24
        %p272 = scmp.lt.s32.totalorder %s271, 1
        %s273 = scalar_select %p272, %s271, 1
        %s274 = smul.addr %s273, 8
        %s275 = scalar_lea.vmem %s2, %s274
        %s276 = smul.u32 2, %s24
      $region24: #{unigcn_forward.1} parent=11 // pred_fallthru
        _
      // Predicated region
      $region25: #{unigcn_forward.1} parent=11 // pred_check
        %p277 = pneg %p125
      $region26: #{unigcn_forward.1} parent=11 // pred_check_branch
        %279 = sbr.rel (%p277) target = $region28
      $region27: #{unigcn_forward.1} parent=11 // pred_region
        _
      $region28: #{unigcn_forward.1} parent=11 // pred_fallthru
        _
      // Predicated region
      $region29: #{unigcn_forward.1} parent=11 // pred_check
        %p280 = pneg %p146
      $region30: #{unigcn_forward.1} parent=11 // pred_check_branch
        %282 = sbr.rel (%p280) target = $region32
      $region31: #{unigcn_forward.1} parent=11 // pred_region
        _
      $region32: #{unigcn_forward.1} parent=11 // pred_fallthru
        _
      // Predicated region
      $region33: #{unigcn_forward.1} parent=11 // pred_check
        %p283 = pneg %p167
      $region34: #{unigcn_forward.1} parent=11 // pred_check_branch
        %285 = sbr.rel (%p283) target = $region36
      $region35: #{unigcn_forward.1} parent=11 // pred_region
        _
      $region36: #{unigcn_forward.1} parent=11 // pred_fallthru
        _
      // Predicated region
      $region37: #{unigcn_forward.1} parent=11 // pred_check
        %p286 = pneg %p188
      $region38: #{unigcn_forward.1} parent=11 // pred_check_branch
        %288 = sbr.rel (%p286) target = $region40
      $region39: #{unigcn_forward.1} parent=11 // pred_region
        _
      $region40: #{unigcn_forward.1} parent=11 // pred_fallthru
        _
      // Predicated region
      $region41: #{unigcn_forward.1} parent=11 // pred_check
        %p289 = pneg %p209
      $region42: #{unigcn_forward.1} parent=11 // pred_check_branch
        %291 = sbr.rel (%p289) target = $region44
      $region43: #{unigcn_forward.1} parent=11 // pred_region
        _
      $region44: #{unigcn_forward.1} parent=11 // pred_fallthru
        _
    $region12: #{unigcn_forward.1} parent=5 // pred_fallthru
      _
    %p292 = scmp.lt.s32.totalorder %s14, 3
    // Predicated region
    $region45: #{unigcn_forward.1} parent=5 // pred_check
      %p293 = pneg %p292
    $region46: #{unigcn_forward.1} parent=5 // pred_check_branch
      %295 = sbr.rel (%p293) target = $region48
    $region47: #{unigcn_forward.1} parent=5 // pred_region
      _
    $region48: #{unigcn_forward.1} parent=5 // pred_fallthru
      _
    %p296 = scmp.le.s32.totalorder 1, %s14
    %p297 = scmp.lt.s32.totalorder %s14, 4
    %p298 = pnand %p296, %p297
    %p299 = pneg %p298
    // Predicated region
    $region49: #{unigcn_forward.1} parent=5 // pred_check
      _
    $region50: #{unigcn_forward.1} parent=5 // pred_check_branch
      %301 = sbr.rel (%p298) target = $region52
    $region51: #{unigcn_forward.1} parent=5 // pred_region
      %s302 = ssub.s32 %s14, 1
      %s303 = smul.u32 2, %s24
      %p304 = scmp.lt.s32.totalorder %s303, 1
      %s305 = scalar_select %p304, %s303, 1
      %s306 = smul.addr %s305, 4
      %s307 = scalar_lea.vmem %s0, %s306
      %p308 = pneg %p52
      %p309 = pneg %p49
      %s310 = smul.u32 2, %s24
      %p311 = scmp.lt.s32.totalorder %s310, 1
      %s312 = scalar_select %p311, %s310, 1
      %s313 = smul.addr %s312, 4
      %s314 = scalar_lea.vmem %s1, %s313
      %p315 = pneg %p78
      %p316 = pneg %p75
      %s317 = smul.u32 2, %s24
      %p318 = scmp.lt.s32.totalorder %s317, 1
      %s319 = scalar_select %p318, %s317, 1
      %s320 = smul.addr %s319, 8
      %s321 = scalar_lea.vmem %s2, %s320
      %p322 = pneg %p104
      %p323 = pneg %p101
      %p324 = pneg %p125
      %p325 = pneg %p122
      %p326 = pneg %p146
      %p327 = pneg %p143
      %p328 = pneg %p167
      %p329 = pneg %p164
      %p330 = pneg %p188
      %p331 = pneg %p185
      %p332 = pneg %p209
      %p333 = pneg %p206
      %p334 = pneg %p235
      %p335 = pneg %p232
      %s336 = smul.u32 2, %s24
      %p337 = scmp.lt.s32.totalorder %s336, 1
      %s338 = scalar_select %p337, %s336, 1
      %s339 = smul.addr %s338, 8
      %s340 = scalar_lea.vmem %s8, %s339
      %s341 = smul.u32 2, %s24
      %p342 = scmp.lt.s32.totalorder %s341, 1
      %s343 = scalar_select %p342, %s341, 1
      %s344 = smul.addr %s343, 4
      %s345 = scalar_lea.vmem %s0, %s344
      %s346 = smul.u32 2, %s24
      %s347 = smul.u32 2, %s24
      %p348 = scmp.lt.s32.totalorder %s347, 1
      %s349 = scalar_select %p348, %s347, 1
      %s350 = smul.addr %s349, 4
      %s351 = scalar_lea.vmem %s1, %s350
      %s352 = smul.u32 2, %s24
      %s353 = smul.u32 2, %s24
      %p354 = scmp.lt.s32.totalorder %s353, 1
      %s355 = scalar_select %p354, %s353, 1
      %s356 = smul.addr %s355, 8
      %s357 = scalar_lea.vmem %s2, %s356
      %s358 = smul.u32 2, %s24
      %s359 = smul.u32 2, %s24
      %p360 = scmp.lt.s32.totalorder %s359, 1
      %s361 = scalar_select %p360, %s359, 1
      %s362 = smul.addr %s361, 8
      %s363 = scalar_lea.vmem %s8, %s362
      %s364 = smul.u32 2, %s24
      %p366 = scmp.ge.s32.totalorder %s23, 1
      %p367 = scmp.eq.s32.totalorder %s24, 0
      %p368 = pnand %p366, %p367
      %p369 = pneg %p368
      // Predicated region
      $region53: #{unigcn_forward.1} parent=51 // pred_check
        _
      $region54: #{unigcn_forward.1} parent=51 // pred_check_branch
        %371 = sbr.rel (%p368) target = $region56
      $region55: #{unigcn_forward.1} parent=51 // pred_region
        %v372 = vld [vmem:[#allocation2] sm:$0xff]
        %v373 = vld [vmem:[#allocation2 + $0x8] sm:$0xff]
        %v374 = vld [vmem:[#allocation2 + $0x10] sm:$0xff]
        %v375 = vld [vmem:[#allocation2 + $0x18] sm:$0xff]
        %v376 = vld [vmem:[#allocation2 + $0x20] sm:$0xff]
        %v377 = vld [vmem:[#allocation2 + $0x28] sm:$0xff]
        %v378 = vld [vmem:[#allocation2 + $0x30] sm:$0xff]
        %v379 = vld [vmem:[#allocation2 + $0x38] sm:$0xff]
        %v380 = vld [vmem:[#allocation2 + $0x40] sm:$0xff]
        %v381 = vld [vmem:[#allocation2 + $0x48] sm:$0xff]
        %v382 = vld [vmem:[#allocation2 + $0x50] sm:$0xff]
        %v383 = vld [vmem:[#allocation2 + $0x58] sm:$0xff]
        %v384 = vld [vmem:[#allocation2 + $0x60] sm:$0xff]
        %v385 = vld [vmem:[#allocation2 + $0x68] sm:$0xff]
        %v386 = vld [vmem:[#allocation2 + $0x70] sm:$0xff]
        %v387 = vld [vmem:[#allocation2 + $0x78] sm:$0xff]
        %v388 = vld [vmem:[%s3] sm:$0xff]
        %v389 = vld [vmem:[%s3 + $0x8] sm:$0xff]
        %v390 = vld [vmem:[%s3 + $0x10] sm:$0xff]
        %v391 = vld [vmem:[%s3 + $0x18] sm:$0xff]
        %v392 = vld [vmem:[%s3 + $0x20] sm:$0xff]
        %v393 = vld [vmem:[%s3 + $0x28] sm:$0xff]
        %v394 = vld [vmem:[%s3 + $0x30] sm:$0xff]
        %v395 = vld [vmem:[%s3 + $0x38] sm:$0xff]
        %v396 = vld [vmem:[%s3 + $0x40] sm:$0xff]
        %v397 = vld [vmem:[%s3 + $0x48] sm:$0xff]
        %v398 = vld [vmem:[%s3 + $0x50] sm:$0xff]
        %v399 = vld [vmem:[%s3 + $0x58] sm:$0xff]
        %v400 = vld [vmem:[%s3 + $0x60] sm:$0xff]
        %v401 = vld [vmem:[%s3 + $0x68] sm:$0xff]
        %v402 = vld [vmem:[%s3 + $0x70] sm:$0xff]
        %v403 = vld [vmem:[%s3 + $0x78] sm:$0xff]
        %405 = vset.pattern.permute.xlu0 0
        %406 = vperm.xlu0 %405, %v388
        %v407 = vpop.permute.xlu0 %406
        %410 = vset.pattern.permute.xlu0 0
        %411 = vperm.xlu0 %410, %v389
        %v412 = vpop.permute.xlu0 %411
        %415 = vset.pattern.permute.xlu0 0
        %416 = vperm.xlu0 %415, %v390
        %v417 = vpop.permute.xlu0 %416
        %420 = vset.pattern.permute.xlu0 0
        %421 = vperm.xlu0 %420, %v391
        %v422 = vpop.permute.xlu0 %421
        %425 = vset.pattern.permute.xlu0 0
        %426 = vperm.xlu0 %425, %v392
        %v427 = vpop.permute.xlu0 %426
        %430 = vset.pattern.permute.xlu0 0
        %431 = vperm.xlu0 %430, %v393
        %v432 = vpop.permute.xlu0 %431
        %435 = vset.pattern.permute.xlu0 0
        %436 = vperm.xlu0 %435, %v394
        %v437 = vpop.permute.xlu0 %436
        %440 = vset.pattern.permute.xlu0 0
        %441 = vperm.xlu0 %440, %v395
        %v442 = vpop.permute.xlu0 %441
        %445 = vset.pattern.permute.xlu0 0
        %446 = vperm.xlu0 %445, %v396
        %v447 = vpop.permute.xlu0 %446
        %450 = vset.pattern.permute.xlu0 0
        %451 = vperm.xlu0 %450, %v397
        %v452 = vpop.permute.xlu0 %451
        %455 = vset.pattern.permute.xlu0 0
        %456 = vperm.xlu0 %455, %v398
        %v457 = vpop.permute.xlu0 %456
        %460 = vset.pattern.permute.xlu0 0
        %461 = vperm.xlu0 %460, %v399
        %v462 = vpop.permute.xlu0 %461
        %465 = vset.pattern.permute.xlu0 0
        %466 = vperm.xlu0 %465, %v400
        %v467 = vpop.permute.xlu0 %466
        %470 = vset.pattern.permute.xlu0 0
        %471 = vperm.xlu0 %470, %v401
        %v472 = vpop.permute.xlu0 %471
        %475 = vset.pattern.permute.xlu0 0
        %476 = vperm.xlu0 %475, %v402
        %v477 = vpop.permute.xlu0 %476
        %480 = vset.pattern.permute.xlu0 0
        %481 = vperm.xlu0 %480, %v403
        %v482 = vpop.permute.xlu0 %481
        %v484 = vmul.f32 %v372, %v407
        %v485 = vmul.f32 %v373, %v412
        %v486 = vmul.f32 %v374, %v417
        %v487 = vmul.f32 %v375, %v422
        %v488 = vmul.f32 %v376, %v427
        %v489 = vmul.f32 %v377, %v432
        %v490 = vmul.f32 %v378, %v437
        %v491 = vmul.f32 %v379, %v442
        %v492 = vmul.f32 %v380, %v447
        %v493 = vmul.f32 %v381, %v452
        %v494 = vmul.f32 %v382, %v457
        %v495 = vmul.f32 %v383, %v462
        %v496 = vmul.f32 %v384, %v467
        %v497 = vmul.f32 %v385, %v472
        %v498 = vmul.f32 %v386, %v477
        %v499 = vmul.f32 %v387, %v482
        %v500 = vpack.c.bf16 %v485, %v484
        %v501 = vpack.c.bf16 %v487, %v486
        %v502 = vpack.c.bf16 %v489, %v488
        %v503 = vpack.c.bf16 %v491, %v490
        %v504 = vpack.c.bf16 %v493, %v492
        %v505 = vpack.c.bf16 %v495, %v494
        %v506 = vpack.c.bf16 %v497, %v496
        %v507 = vpack.c.bf16 %v499, %v498
        %v516 = vunpack.c.l.b16 %v500
        %v517 = vunpack.c.h.b16 %v500
        %v518 = vunpack.c.l.b16 %v501
        %v519 = vunpack.c.h.b16 %v501
        %v520 = vunpack.c.l.b16 %v502
        %v521 = vunpack.c.h.b16 %v502
        %v522 = vunpack.c.l.b16 %v503
        %v523 = vunpack.c.h.b16 %v503
        %v524 = vunpack.c.l.b16 %v504
        %v525 = vunpack.c.h.b16 %v504
        %v526 = vunpack.c.l.b16 %v505
        %v527 = vunpack.c.h.b16 %v505
        %v528 = vunpack.c.l.b16 %v506
        %v529 = vunpack.c.h.b16 %v506
        %v530 = vunpack.c.l.b16 %v507
        %v531 = vunpack.c.h.b16 %v507
        %v532 = vpack.c.b16 %v516, %v516
        %v533 = vpack.c.b16 %v517, %v517
        %v534 = vpack.c.b16 %v518, %v518
        %v535 = vpack.c.b16 %v519, %v519
        %v536 = vpack.c.b16 %v520, %v520
        %v537 = vpack.c.b16 %v521, %v521
        %v538 = vpack.c.b16 %v522, %v522
        %v539 = vpack.c.b16 %v523, %v523
        %v540 = vpack.c.b16 %v524, %v524
        %v541 = vpack.c.b16 %v525, %v525
        %v542 = vpack.c.b16 %v526, %v526
        %v543 = vpack.c.b16 %v527, %v527
        %v544 = vpack.c.b16 %v528, %v528
        %v545 = vpack.c.b16 %v529, %v529
        %v546 = vpack.c.b16 %v530, %v530
        %v547 = vpack.c.b16 %v531, %v531
        %564 = vst [vmem:[#allocation3] sm:$0xf] %v532
        %565 = vst [vmem:[#allocation3 + $0x4] sm:$0xf] %v533
        %566 = vst [vmem:[#allocation3 + $0x8] sm:$0xf] %v534
        %567 = vst [vmem:[#allocation3 + $0xc] sm:$0xf] %v535
        %568 = vst [vmem:[#allocation3 + $0x10] sm:$0xf] %v536
        %569 = vst [vmem:[#allocation3 + $0x14] sm:$0xf] %v537
        %570 = vst [vmem:[#allocation3 + $0x18] sm:$0xf] %v538
        %571 = vst [vmem:[#allocation3 + $0x1c] sm:$0xf] %v539
        %572 = vst [vmem:[#allocation3 + $0x20] sm:$0xf] %v540
        %573 = vst [vmem:[#allocation3 + $0x24] sm:$0xf] %v541
        %574 = vst [vmem:[#allocation3 + $0x28] sm:$0xf] %v542
        %575 = vst [vmem:[#allocation3 + $0x2c] sm:$0xf] %v543
        %576 = vst [vmem:[#allocation3 + $0x30] sm:$0xf] %v544
        %577 = vst [vmem:[#allocation3 + $0x34] sm:$0xf] %v545
        %578 = vst [vmem:[#allocation3 + $0x38] sm:$0xf] %v546
        %579 = vst [vmem:[#allocation3 + $0x3c] sm:$0xf] %v547
      $region56: #{unigcn_forward.1} parent=51 // pred_fallthru
        _
      %p580 = scmp.le.s32.totalorder %s23, 1
      %p581 = pnand %p580, %p367
      %p582 = pneg %p581
      // Predicated region
      $region57: #{unigcn_forward.1} parent=51 // pred_check
        _
      $region58: #{unigcn_forward.1} parent=51 // pred_check_branch
        %584 = sbr.rel (%p581) target = $region60
      $region59: #{unigcn_forward.1} parent=51 // pred_region
        %585 = vst [vmem:[#allocation2] sm:$0xff] 0.0
        %586 = vst [vmem:[#allocation2 + $0x8] sm:$0xff] 0.0
        %587 = vst [vmem:[#allocation2 + $0x10] sm:$0xff] 0.0
        %588 = vst [vmem:[#allocation2 + $0x18] sm:$0xff] 0.0
        %589 = vst [vmem:[#allocation2 + $0x20] sm:$0xff] 0.0
        %590 = vst [vmem:[#allocation2 + $0x28] sm:$0xff] 0.0
        %591 = vst [vmem:[#allocation2 + $0x30] sm:$0xff] 0.0
        %592 = vst [vmem:[#allocation2 + $0x38] sm:$0xff] 0.0
        %593 = vst [vmem:[#allocation2 + $0x40] sm:$0xff] 0.0
        %594 = vst [vmem:[#allocation2 + $0x48] sm:$0xff] 0.0
        %595 = vst [vmem:[#allocation2 + $0x50] sm:$0xff] 0.0
        %596 = vst [vmem:[#allocation2 + $0x58] sm:$0xff] 0.0
        %597 = vst [vmem:[#allocation2 + $0x60] sm:$0xff] 0.0
        %598 = vst [vmem:[#allocation2 + $0x68] sm:$0xff] 0.0
        %599 = vst [vmem:[#allocation2 + $0x70] sm:$0xff] 0.0
        %600 = vst [vmem:[#allocation2 + $0x78] sm:$0xff] 0.0
      $region60: #{unigcn_forward.1} parent=51 // pred_fallthru
        _
      %v601 = vld [vmem:[%s351] sm:$0xf]
      %v602 = vld [vmem:[%s351 + $0x4] sm:$0xf]
      %p603 = scmp.ne.s32.totalorder %s23, 2
      // Predicated region
      $region61: #{unigcn_forward.1} parent=51 // pred_check
        %p604 = pneg %p603
      $region62: #{unigcn_forward.1} parent=51 // pred_check_branch
        %606 = sbr.rel (%p604) target = $region64
      $region63: #{unigcn_forward.1} parent=51 // pred_region
        %607 = vst [vmem:[%s363] sm:$0xff] 0.0
        %608 = vst [vmem:[%s363 + $0x8] sm:$0xff] 0.0
      $region64: #{unigcn_forward.1} parent=51 // pred_fallthru
        _
      %p609 = scmp.eq.s32.totalorder %s23, 0
      // Predicated region
      $region65: #{unigcn_forward.1} parent=51 // pred_check
        %p610 = pneg %p609
      $region66: #{unigcn_forward.1} parent=51 // pred_check_branch
        %612 = sbr.rel (%p610) target = $region68
      $region67: #{unigcn_forward.1} parent=51 // pred_region
        %v613 = vld [vmem:[%s345] sm:$0xf]
        %v614 = vld [vmem:[%s345 + $0x4] sm:$0xf]
        %v615 = vld [vmem:[%s4] sm:$0xf]
        %v616 = vld [vmem:[%s4 + $0x4] sm:$0xf]
        %v617 = vld [vmem:[%s4 + $0x8] sm:$0xf]
        %v618 = vld [vmem:[%s4 + $0xc] sm:$0xf]
        %v619 = vld [vmem:[%s4 + $0x10] sm:$0xf]
        %v620 = vld [vmem:[%s4 + $0x14] sm:$0xf]
        %v621 = vld [vmem:[%s4 + $0x18] sm:$0xf]
        %v622 = vld [vmem:[%s4 + $0x1c] sm:$0xf]
        %v623 = vld [vmem:[%s4 + $0x20] sm:$0xf]
        %v624 = vld [vmem:[%s4 + $0x24] sm:$0xf]
        %v625 = vld [vmem:[%s4 + $0x28] sm:$0xf]
        %v626 = vld [vmem:[%s4 + $0x2c] sm:$0xf]
        %v627 = vld [vmem:[%s4 + $0x30] sm:$0xf]
        %v628 = vld [vmem:[%s4 + $0x34] sm:$0xf]
        %v629 = vld [vmem:[%s4 + $0x38] sm:$0xf]
        %v630 = vld [vmem:[%s4 + $0x3c] sm:$0xf]
        %v631 = vld [vmem:[%s5] sm:$0x1]
        %v633 = vlaneseq
        %v634 = vshrl.u32 %v633, 7
        %v635 = vsub.s32 0, %v634
        %v636 = vrot.slane %v631, %v635
        %v640 = vunpack.c.l.b16 %v613
        %v641 = vunpack.c.l.b16 %v614
        %v642 = vpack.c.b16 %v641, %v640
        %v660 = vunpack.c.l.b16 %v615
        %v661 = vunpack.c.l.b16 %v616
        %v662 = vunpack.c.l.b16 %v617
        %v663 = vunpack.c.l.b16 %v618
        %v664 = vunpack.c.l.b16 %v619
        %v665 = vunpack.c.l.b16 %v620
        %v666 = vunpack.c.l.b16 %v621
        %v667 = vunpack.c.l.b16 %v622
        %v668 = vunpack.c.l.b16 %v623
        %v669 = vunpack.c.l.b16 %v624
        %v670 = vunpack.c.l.b16 %v625
        %v671 = vunpack.c.l.b16 %v626
        %v672 = vunpack.c.l.b16 %v627
        %v673 = vunpack.c.l.b16 %v628
        %v674 = vunpack.c.l.b16 %v629
        %v675 = vunpack.c.l.b16 %v630
        %v676 = vpack.c.b16 %v661, %v660
        %v677 = vpack.c.b16 %v663, %v662
        %v678 = vpack.c.b16 %v665, %v664
        %v679 = vpack.c.b16 %v667, %v666
        %v680 = vpack.c.b16 %v669, %v668
        %v681 = vpack.c.b16 %v671, %v670
        %v682 = vpack.c.b16 %v673, %v672
        %v683 = vpack.c.b16 %v675, %v674
        %692 = vmatprep.subr.bf16.mxu0 0
        %693 = vmatpush1.bf16.msra.mxu0 %v683
        %694 = vmatprep.subr.bf16.mxu0 0
        %695 = vmatpush1.bf16.msra.mxu0 %v682
        %696 = vmatprep.subr.bf16.mxu0 0
        %697 = vmatpush1.bf16.msra.mxu0 %v681
        %698 = vmatprep.subr.bf16.mxu0 0
        %699 = vmatpush1.bf16.msra.mxu0 %v680
        %700 = vmatprep.subr.bf16.mxu0 0
        %701 = vmatpush1.bf16.msra.mxu0 %v679
        %702 = vmatprep.subr.bf16.mxu0 0
        %703 = vmatpush1.bf16.msra.mxu0 %v678
        %704 = vmatprep.subr.bf16.mxu0 0
        %705 = vmatpush1.bf16.msra.mxu0 %v677
        %706 = vmatprep.subr.bf16.mxu0 0
        %707 = vmatpush1.bf16.msra.mxu0 %v676
        %708 = vmatprep.subr.bf16.mxu0 0
        %709 = vmatpush2.bf16.msra.mxu0 0
        %710 = vmatprep.subr.bf16.mxu0 0
        %711 = vmatpush2.bf16.msra.mxu0 0
        %712 = vmatprep.subr.bf16.mxu0 0
        %713 = vmatpush2.bf16.msra.mxu0 0
        %714 = vmatprep.subr.bf16.mxu0 0
        %715 = vmatpush2.bf16.msra.mxu0 0
        %716 = vmatprep.subr.bf16.mxu0 0
        %717 = vmatpush2.bf16.msra.mxu0 0
        %718 = vmatprep.subr.bf16.mxu0 0
        %719 = vmatpush2.bf16.msra.mxu0 0
        %720 = vmatprep.subr.bf16.mxu0 0
        %721 = vmatpush2.bf16.msra.mxu0 0
        %722 = vmatprep.subr.bf16.mxu0 0
        %723 = vmatpush2.bf16.msra.mxu0 0
        %724 = vmatprep.mubr.bf16.mxu0 0
        %725 = vmatmul.mubr.bf16.gmra.mxu0 %v642
        %v726 = vpop.f32.mrf.mxu0
        %v727 = vadd.f32 %v636, %v726
        %v728 = vpop.f32.mrf.mxu0
        %v729 = vpop.f32.mrf.mxu0
        %v730 = vadd.f32 %v636, %v729
        %v731 = vpop.f32.mrf.mxu0
        %732 = vdwg.mxu0
        %v733 = vld [vmem:[#allocation2] sm:$0xff]
        %v734 = vld [vmem:[#allocation2 + $0x8] sm:$0xff]
        %v735 = vld [vmem:[#allocation2 + $0x10] sm:$0xff]
        %v736 = vld [vmem:[#allocation2 + $0x18] sm:$0xff]
        %v737 = vld [vmem:[#allocation2 + $0x20] sm:$0xff]
        %v738 = vld [vmem:[#allocation2 + $0x28] sm:$0xff]
        %v739 = vld [vmem:[#allocation2 + $0x30] sm:$0xff]
        %v740 = vld [vmem:[#allocation2 + $0x38] sm:$0xff]
        %v741 = vld [vmem:[#allocation2 + $0x40] sm:$0xff]
        %v742 = vld [vmem:[#allocation2 + $0x48] sm:$0xff]
        %v743 = vld [vmem:[#allocation2 + $0x50] sm:$0xff]
        %v744 = vld [vmem:[#allocation2 + $0x58] sm:$0xff]
        %v745 = vld [vmem:[#allocation2 + $0x60] sm:$0xff]
        %v746 = vld [vmem:[#allocation2 + $0x68] sm:$0xff]
        %v747 = vld [vmem:[#allocation2 + $0x70] sm:$0xff]
        %v748 = vld [vmem:[#allocation2 + $0x78] sm:$0xff]
        %v749 = vpack.c.bf16 %v730, %v727
        %v752 = vunpack.c.l.b16 %v601
        %v753 = vunpack.c.l.b16 %v602
        %v754 = vpack.c.b16 %v753, %v752
        %756 = vxpose.xlu0.c.b16.start [1/8] %v754, 128
        %757 = vxpose.xlu0.c.b16.cont [2/8] 0, 128
        %758 = vxpose.xlu0.c.b16.cont [3/8] 0, 128
        %759 = vxpose.xlu0.c.b16.cont [4/8] 0, 128
        %760 = vxpose.xlu0.c.b16.cont [5/8] 0, 128
        %761 = vxpose.xlu0.c.b16.cont [6/8] 0, 128
        %762 = vxpose.xlu0.c.b16.cont [7/8] 0, 128
        %763 = vxpose.xlu0.c.b16.end [8/8] 0, 128
        %v764 = vpop.trf.xlu0
        %v765 = vpop.trf.xlu0
        %v766 = vpop.trf.xlu0
        %v767 = vpop.trf.xlu0
        %v768 = vpop.trf.xlu0
        %v769 = vpop.trf.xlu0
        %v770 = vpop.trf.xlu0
        %v771 = vpop.trf.xlu0
        %vm772 = vcmask 130048
        %v774 = vsel %vm772, %v764, 0
        %v777 = vsel %vm772, %v765, 0
        %v780 = vsel %vm772, %v766, 0
        %v783 = vsel %vm772, %v767, 0
        %v786 = vsel %vm772, %v768, 0
        %v789 = vsel %vm772, %v769, 0
        %v792 = vsel %vm772, %v770, 0
        %v795 = vsel %vm772, %v771, 0
        %797 = vmatprep.subr.bf16.mxu0 0
        %798 = vmatpush1.bf16.msra.mxu0 0
        %799 = vmatprep.subr.bf16.mxu0 0
        %800 = vmatpush1.bf16.msra.mxu0 0
        %801 = vmatprep.subr.bf16.mxu0 0
        %802 = vmatpush1.bf16.msra.mxu0 0
        %803 = vmatprep.subr.bf16.mxu0 0
        %804 = vmatpush1.bf16.msra.mxu0 0
        %805 = vmatprep.subr.bf16.mxu0 0
        %806 = vmatpush1.bf16.msra.mxu0 0
        %807 = vmatprep.subr.bf16.mxu0 0
        %808 = vmatpush1.bf16.msra.mxu0 0
        %809 = vmatprep.subr.bf16.mxu0 0
        %810 = vmatpush1.bf16.msra.mxu0 0
        %811 = vmatprep.subr.bf16.mxu0 0
        %812 = vmatpush1.bf16.msra.mxu0 %v749
        %813 = vmatprep.subr.bf16.mxu0 0
        %814 = vmatpush2.bf16.msra.mxu0 0
        %815 = vmatprep.subr.bf16.mxu0 0
        %816 = vmatpush2.bf16.msra.mxu0 0
        %817 = vmatprep.subr.bf16.mxu0 0
        %818 = vmatpush2.bf16.msra.mxu0 0
        %819 = vmatprep.subr.bf16.mxu0 0
        %820 = vmatpush2.bf16.msra.mxu0 0
        %821 = vmatprep.subr.bf16.mxu0 0
        %822 = vmatpush2.bf16.msra.mxu0 0
        %823 = vmatprep.subr.bf16.mxu0 0
        %824 = vmatpush2.bf16.msra.mxu0 0
        %825 = vmatprep.subr.bf16.mxu0 0
        %826 = vmatpush2.bf16.msra.mxu0 0
        %827 = vmatprep.subr.bf16.mxu0 0
        %828 = vmatpush2.bf16.msra.mxu0 0
        %829 = vmatprep.mubr.bf16.mxu0 0
        %830 = vmatmul.mubr.bf16.gmra.mxu0 %v774
        %v831 = vpop.f32.mrf.mxu0
        %v832 = vadd.f32 0.0, %v831
        %v833 = vpop.f32.mrf.mxu0
        %v834 = vpop.f32.mrf.mxu0
        %v835 = vadd.f32 0.0, %v834
        %v836 = vpop.f32.mrf.mxu0
        %837 = vmatprep.mubr.bf16.mxu0 0
        %838 = vmatmul.mubr.bf16.gmra.mxu0 %v777
        %v839 = vpop.f32.mrf.mxu0
        %v840 = vadd.f32 0.0, %v839
        %v841 = vpop.f32.mrf.mxu0
        %v842 = vpop.f32.mrf.mxu0
        %v843 = vadd.f32 0.0, %v842
        %v844 = vpop.f32.mrf.mxu0
        %845 = vmatprep.mubr.bf16.mxu0 0
        %846 = vmatmul.mubr.bf16.gmra.mxu0 %v780
        %v847 = vpop.f32.mrf.mxu0
        %v848 = vadd.f32 0.0, %v847
        %v849 = vpop.f32.mrf.mxu0
        %v850 = vpop.f32.mrf.mxu0
        %v851 = vadd.f32 0.0, %v850
        %v852 = vpop.f32.mrf.mxu0
        %853 = vmatprep.mubr.bf16.mxu0 0
        %854 = vmatmul.mubr.bf16.gmra.mxu0 %v783
        %v855 = vpop.f32.mrf.mxu0
        %v856 = vadd.f32 0.0, %v855
        %v857 = vpop.f32.mrf.mxu0
        %v858 = vpop.f32.mrf.mxu0
        %v859 = vadd.f32 0.0, %v858
        %v860 = vpop.f32.mrf.mxu0
        %861 = vmatprep.mubr.bf16.mxu0 0
        %862 = vmatmul.mubr.bf16.gmra.mxu0 %v786
        %v863 = vpop.f32.mrf.mxu0
        %v864 = vadd.f32 0.0, %v863
        %v865 = vpop.f32.mrf.mxu0
        %v866 = vpop.f32.mrf.mxu0
        %v867 = vadd.f32 0.0, %v866
        %v868 = vpop.f32.mrf.mxu0
        %869 = vmatprep.mubr.bf16.mxu0 0
        %870 = vmatmul.mubr.bf16.gmra.mxu0 %v789
        %v871 = vpop.f32.mrf.mxu0
        %v872 = vadd.f32 0.0, %v871
        %v873 = vpop.f32.mrf.mxu0
        %v874 = vpop.f32.mrf.mxu0
        %v875 = vadd.f32 0.0, %v874
        %v876 = vpop.f32.mrf.mxu0
        %877 = vmatprep.mubr.bf16.mxu0 0
        %878 = vmatmul.mubr.bf16.gmra.mxu0 %v792
        %v879 = vpop.f32.mrf.mxu0
        %v880 = vadd.f32 0.0, %v879
        %v881 = vpop.f32.mrf.mxu0
        %v882 = vpop.f32.mrf.mxu0
        %v883 = vadd.f32 0.0, %v882
        %v884 = vpop.f32.mrf.mxu0
        %885 = vmatprep.mubr.bf16.mxu0 0
        %886 = vmatmul.mubr.bf16.gmra.mxu0 %v795
        %v887 = vpop.f32.mrf.mxu0
        %v888 = vadd.f32 0.0, %v887
        %v889 = vpop.f32.mrf.mxu0
        %v890 = vpop.f32.mrf.mxu0
        %v891 = vadd.f32 0.0, %v890
        %v892 = vpop.f32.mrf.mxu0
        %893 = vdwg.mxu0
        %v894 = vadd.f32 %v733, %v832
        %v895 = vadd.f32 %v734, %v835
        %v896 = vadd.f32 %v735, %v840
        %v897 = vadd.f32 %v736, %v843
        %v898 = vadd.f32 %v737, %v848
        %v899 = vadd.f32 %v738, %v851
        %v900 = vadd.f32 %v739, %v856
        %v901 = vadd.f32 %v740, %v859
        %v902 = vadd.f32 %v741, %v864
        %v903 = vadd.f32 %v742, %v867
        %v904 = vadd.f32 %v743, %v872
        %v905 = vadd.f32 %v744, %v875
        %v906 = vadd.f32 %v745, %v880
        %v907 = vadd.f32 %v746, %v883
        %v908 = vadd.f32 %v747, %v888
        %v909 = vadd.f32 %v748, %v891
        %910 = vst [vmem:[#allocation2] sm:$0xff] %v894
        %911 = vst [vmem:[#allocation2 + $0x8] sm:$0xff] %v895
        %912 = vst [vmem:[#allocation2 + $0x10] sm:$0xff] %v896
        %913 = vst [vmem:[#allocation2 + $0x18] sm:$0xff] %v897
        %914 = vst [vmem:[#allocation2 + $0x20] sm:$0xff] %v898
        %915 = vst [vmem:[#allocation2 + $0x28] sm:$0xff] %v899
        %916 = vst [vmem:[#allocation2 + $0x30] sm:$0xff] %v900
        %917 = vst [vmem:[#allocation2 + $0x38] sm:$0xff] %v901
        %918 = vst [vmem:[#allocation2 + $0x40] sm:$0xff] %v902
        %919 = vst [vmem:[#allocation2 + $0x48] sm:$0xff] %v903
        %920 = vst [vmem:[#allocation2 + $0x50] sm:$0xff] %v904
        %921 = vst [vmem:[#allocation2 + $0x58] sm:$0xff] %v905
        %922 = vst [vmem:[#allocation2 + $0x60] sm:$0xff] %v906
        %923 = vst [vmem:[#allocation2 + $0x68] sm:$0xff] %v907
        %924 = vst [vmem:[#allocation2 + $0x70] sm:$0xff] %v908
        %925 = vst [vmem:[#allocation2 + $0x78] sm:$0xff] %v909
      $region68: #{unigcn_forward.1} parent=51 // pred_fallthru
        _
      %p926 = scmp.eq.s32.totalorder %s23, 1
      // Predicated region
      $region69: #{unigcn_forward.1} parent=51 // pred_check
        %p927 = pneg %p926
      $region70: #{unigcn_forward.1} parent=51 // pred_check_branch
        %929 = sbr.rel (%p927) target = $region72
      $region71: #{unigcn_forward.1} parent=51 // pred_region
        %v930 = vld [vmem:[#allocation3] sm:$0xf]
        %v931 = vld [vmem:[#allocation3 + $0x4] sm:$0xf]
        %v932 = vld [vmem:[#allocation3 + $0x8] sm:$0xf]
        %v933 = vld [vmem:[#allocation3 + $0xc] sm:$0xf]
        %v934 = vld [vmem:[#allocation3 + $0x10] sm:$0xf]
        %v935 = vld [vmem:[#allocation3 + $0x14] sm:$0xf]
        %v936 = vld [vmem:[#allocation3 + $0x18] sm:$0xf]
        %v937 = vld [vmem:[#allocation3 + $0x1c] sm:$0xf]
        %v938 = vld [vmem:[#allocation3 + $0x20] sm:$0xf]
        %v939 = vld [vmem:[#allocation3 + $0x24] sm:$0xf]
        %v940 = vld [vmem:[#allocation3 + $0x28] sm:$0xf]
        %v941 = vld [vmem:[#allocation3 + $0x2c] sm:$0xf]
        %v942 = vld [vmem:[#allocation3 + $0x30] sm:$0xf]
        %v943 = vld [vmem:[#allocation3 + $0x34] sm:$0xf]
        %v944 = vld [vmem:[#allocation3 + $0x38] sm:$0xf]
        %v945 = vld [vmem:[#allocation3 + $0x3c] sm:$0xf]
        %v948 = vunpack.c.l.b16 %v601
        %v949 = vunpack.c.l.b16 %v602
        %v950 = vpack.c.b16 %v949, %v948
        %v968 = vunpack.c.l.b16 %v930
        %v969 = vunpack.c.l.b16 %v931
        %v970 = vunpack.c.l.b16 %v932
        %v971 = vunpack.c.l.b16 %v933
        %v972 = vunpack.c.l.b16 %v934
        %v973 = vunpack.c.l.b16 %v935
        %v974 = vunpack.c.l.b16 %v936
        %v975 = vunpack.c.l.b16 %v937
        %v976 = vunpack.c.l.b16 %v938
        %v977 = vunpack.c.l.b16 %v939
        %v978 = vunpack.c.l.b16 %v940
        %v979 = vunpack.c.l.b16 %v941
        %v980 = vunpack.c.l.b16 %v942
        %v981 = vunpack.c.l.b16 %v943
        %v982 = vunpack.c.l.b16 %v944
        %v983 = vunpack.c.l.b16 %v945
        %v984 = vpack.c.b16 %v969, %v968
        %v985 = vpack.c.b16 %v971, %v970
        %v986 = vpack.c.b16 %v973, %v972
        %v987 = vpack.c.b16 %v975, %v974
        %v988 = vpack.c.b16 %v977, %v976
        %v989 = vpack.c.b16 %v979, %v978
        %v990 = vpack.c.b16 %v981, %v980
        %v991 = vpack.c.b16 %v983, %v982
        %1000 = vmatprep.subr.bf16.mxu0 0
        %1001 = vmatpush1.bf16.msra.mxu0 %v991
        %1002 = vmatprep.subr.bf16.mxu0 0
        %1003 = vmatpush1.bf16.msra.mxu0 %v990
        %1004 = vmatprep.subr.bf16.mxu0 0
        %1005 = vmatpush1.bf16.msra.mxu0 %v989
        %1006 = vmatprep.subr.bf16.mxu0 0
        %1007 = vmatpush1.bf16.msra.mxu0 %v988
        %1008 = vmatprep.subr.bf16.mxu0 0
        %1009 = vmatpush1.bf16.msra.mxu0 %v987
        %1010 = vmatprep.subr.bf16.mxu0 0
        %1011 = vmatpush1.bf16.msra.mxu0 %v986
        %1012 = vmatprep.subr.bf16.mxu0 0
        %1013 = vmatpush1.bf16.msra.mxu0 %v985
        %1014 = vmatprep.subr.bf16.mxu0 0
        %1015 = vmatpush1.bf16.msra.mxu0 %v984
        %1016 = vmatprep.subr.bf16.mxu0 0
        %1017 = vmatpush2.bf16.msra.mxu0 0
        %1018 = vmatprep.subr.bf16.mxu0 0
        %1019 = vmatpush2.bf16.msra.mxu0 0
        %1020 = vmatprep.subr.bf16.mxu0 0
        %1021 = vmatpush2.bf16.msra.mxu0 0
        %1022 = vmatprep.subr.bf16.mxu0 0
        %1023 = vmatpush2.bf16.msra.mxu0 0
        %1024 = vmatprep.subr.bf16.mxu0 0
        %1025 = vmatpush2.bf16.msra.mxu0 0
        %1026 = vmatprep.subr.bf16.mxu0 0
        %1027 = vmatpush2.bf16.msra.mxu0 0
        %1028 = vmatprep.subr.bf16.mxu0 0
        %1029 = vmatpush2.bf16.msra.mxu0 0
        %1030 = vmatprep.subr.bf16.mxu0 0
        %1031 = vmatpush2.bf16.msra.mxu0 0
        %1032 = vmatprep.mubr.bf16.mxu0 0
        %1033 = vmatmul.mubr.bf16.gmra.mxu0 %v950
        %v1034 = vpop.f32.mrf.mxu0
        %v1035 = vadd.f32 0.0, %v1034
        %v1036 = vpop.f32.mrf.mxu0
        %v1037 = vpop.f32.mrf.mxu0
        %v1038 = vadd.f32 0.0, %v1037
        %v1039 = vpop.f32.mrf.mxu0
        %1040 = vdwg.mxu0
        %v1041 = vld [vmem:[%s357] sm:$0xff]
        %v1042 = vld [vmem:[%s357 + $0x8] sm:$0xff]
        %1044 = vset.pattern.permute.xlu0 0
        %1045 = vperm.xlu0 %1044, %v1041
        %v1046 = vpop.permute.xlu0 %1045
        %1049 = vset.pattern.permute.xlu0 0
        %1050 = vperm.xlu0 %1049, %v1042
        %v1051 = vpop.permute.xlu0 %1050
        %v1053 = vmul.f32 %v1035, %v1046
        %v1054 = vmul.f32 %v1038, %v1051
        %v1055 = vmax.f32 %v1053, 0.0
        %v1056 = vmax.f32 %v1054, 0.0
        %v1057 = vpack.c.bf16 %v1056, %v1055
        %v1058 = vld [vmem:[%s6] sm:$0xf]
        %v1059 = vld [vmem:[%s6 + $0x4] sm:$0xf]
        %v1060 = vld [vmem:[%s6 + $0x8] sm:$0xf]
        %v1061 = vld [vmem:[%s6 + $0xc] sm:$0xf]
        %v1062 = vld [vmem:[%s6 + $0x10] sm:$0xf]
        %v1063 = vld [vmem:[%s6 + $0x14] sm:$0xf]
        %v1064 = vld [vmem:[%s6 + $0x18] sm:$0xf]
        %v1065 = vld [vmem:[%s6 + $0x1c] sm:$0xf]
        %v1066 = vld [vmem:[%s6 + $0x20] sm:$0xf]
        %v1067 = vld [vmem:[%s6 + $0x24] sm:$0xf]
        %v1068 = vld [vmem:[%s6 + $0x28] sm:$0xf]
        %v1069 = vld [vmem:[%s6 + $0x2c] sm:$0xf]
        %v1070 = vld [vmem:[%s6 + $0x30] sm:$0xf]
        %v1071 = vld [vmem:[%s6 + $0x34] sm:$0xf]
        %v1072 = vld [vmem:[%s6 + $0x38] sm:$0xf]
        %v1073 = vld [vmem:[%s6 + $0x3c] sm:$0xf]
        %v1074 = vld [vmem:[%s7] sm:$0x1]
        %v1076 = vlaneseq
        %v1077 = vshrl.u32 %v1076, 7
        %v1078 = vsub.s32 0, %v1077
        %v1079 = vrot.slane %v1074, %v1078
        %v1097 = vunpack.c.l.b16 %v1058
        %v1098 = vunpack.c.l.b16 %v1059
        %v1099 = vunpack.c.l.b16 %v1060
        %v1100 = vunpack.c.l.b16 %v1061
        %v1101 = vunpack.c.l.b16 %v1062
        %v1102 = vunpack.c.l.b16 %v1063
        %v1103 = vunpack.c.l.b16 %v1064
        %v1104 = vunpack.c.l.b16 %v1065
        %v1105 = vunpack.c.l.b16 %v1066
        %v1106 = vunpack.c.l.b16 %v1067
        %v1107 = vunpack.c.l.b16 %v1068
        %v1108 = vunpack.c.l.b16 %v1069
        %v1109 = vunpack.c.l.b16 %v1070
        %v1110 = vunpack.c.l.b16 %v1071
        %v1111 = vunpack.c.l.b16 %v1072
        %v1112 = vunpack.c.l.b16 %v1073
        %v1113 = vpack.c.b16 %v1098, %v1097
        %v1114 = vpack.c.b16 %v1100, %v1099
        %v1115 = vpack.c.b16 %v1102, %v1101
        %v1116 = vpack.c.b16 %v1104, %v1103
        %v1117 = vpack.c.b16 %v1106, %v1105
        %v1118 = vpack.c.b16 %v1108, %v1107
        %v1119 = vpack.c.b16 %v1110, %v1109
        %v1120 = vpack.c.b16 %v1112, %v1111
        %1129 = vmatprep.subr.bf16.mxu0 0
        %1130 = vmatpush1.bf16.msra.mxu0 %v1120
        %1131 = vmatprep.subr.bf16.mxu0 0
        %1132 = vmatpush1.bf16.msra.mxu0 %v1119
        %1133 = vmatprep.subr.bf16.mxu0 0
        %1134 = vmatpush1.bf16.msra.mxu0 %v1118
        %1135 = vmatprep.subr.bf16.mxu0 0
        %1136 = vmatpush1.bf16.msra.mxu0 %v1117
        %1137 = vmatprep.subr.bf16.mxu0 0
        %1138 = vmatpush1.bf16.msra.mxu0 %v1116
        %1139 = vmatprep.subr.bf16.mxu0 0
        %1140 = vmatpush1.bf16.msra.mxu0 %v1115
        %1141 = vmatprep.subr.bf16.mxu0 0
        %1142 = vmatpush1.bf16.msra.mxu0 %v1114
        %1143 = vmatprep.subr.bf16.mxu0 0
        %1144 = vmatpush1.bf16.msra.mxu0 %v1113
        %1145 = vmatprep.subr.bf16.mxu0 0
        %1146 = vmatpush2.bf16.msra.mxu0 0
        %1147 = vmatprep.subr.bf16.mxu0 0
        %1148 = vmatpush2.bf16.msra.mxu0 0
        %1149 = vmatprep.subr.bf16.mxu0 0
        %1150 = vmatpush2.bf16.msra.mxu0 0
        %1151 = vmatprep.subr.bf16.mxu0 0
        %1152 = vmatpush2.bf16.msra.mxu0 0
        %1153 = vmatprep.subr.bf16.mxu0 0
        %1154 = vmatpush2.bf16.msra.mxu0 0
        %1155 = vmatprep.subr.bf16.mxu0 0
        %1156 = vmatpush2.bf16.msra.mxu0 0
        %1157 = vmatprep.subr.bf16.mxu0 0
        %1158 = vmatpush2.bf16.msra.mxu0 0
        %1159 = vmatprep.subr.bf16.mxu0 0
        %1160 = vmatpush2.bf16.msra.mxu0 0
        %1161 = vmatprep.mubr.bf16.mxu0 0
        %1162 = vmatmul.mubr.bf16.gmra.mxu0 %v1057
        %v1163 = vpop.f32.mrf.mxu0
        %v1164 = vadd.f32 %v1079, %v1163
        %v1165 = vpop.f32.mrf.mxu0
        %v1166 = vpop.f32.mrf.mxu0
        %v1167 = vadd.f32 %v1079, %v1166
        %v1168 = vpop.f32.mrf.mxu0
        %1169 = vdwg.mxu0
        %v1170 = vld [vmem:[#allocation2] sm:$0xff]
        %v1171 = vld [vmem:[#allocation2 + $0x8] sm:$0xff]
        %v1172 = vld [vmem:[#allocation2 + $0x10] sm:$0xff]
        %v1173 = vld [vmem:[#allocation2 + $0x18] sm:$0xff]
        %v1174 = vld [vmem:[#allocation2 + $0x20] sm:$0xff]
        %v1175 = vld [vmem:[#allocation2 + $0x28] sm:$0xff]
        %v1176 = vld [vmem:[#allocation2 + $0x30] sm:$0xff]
        %v1177 = vld [vmem:[#allocation2 + $0x38] sm:$0xff]
        %v1178 = vld [vmem:[#allocation2 + $0x40] sm:$0xff]
        %v1179 = vld [vmem:[#allocation2 + $0x48] sm:$0xff]
        %v1180 = vld [vmem:[#allocation2 + $0x50] sm:$0xff]
        %v1181 = vld [vmem:[#allocation2 + $0x58] sm:$0xff]
        %v1182 = vld [vmem:[#allocation2 + $0x60] sm:$0xff]
        %v1183 = vld [vmem:[#allocation2 + $0x68] sm:$0xff]
        %v1184 = vld [vmem:[#allocation2 + $0x70] sm:$0xff]
        %v1185 = vld [vmem:[#allocation2 + $0x78] sm:$0xff]
        %v1186 = vpack.c.bf16 %v1167, %v1164
        %1187 = vxpose.xlu0.c.b16.start [1/8] %v950, 128
        %1188 = vxpose.xlu0.c.b16.cont [2/8] 0, 128
        %1189 = vxpose.xlu0.c.b16.cont [3/8] 0, 128
        %1190 = vxpose.xlu0.c.b16.cont [4/8] 0, 128
        %1191 = vxpose.xlu0.c.b16.cont [5/8] 0, 128
        %1192 = vxpose.xlu0.c.b16.cont [6/8] 0, 128
        %1193 = vxpose.xlu0.c.b16.cont [7/8] 0, 128
        %1194 = vxpose.xlu0.c.b16.end [8/8] 0, 128
        %v1195 = vpop.trf.xlu0
        %v1196 = vpop.trf.xlu0
        %v1197 = vpop.trf.xlu0
        %v1198 = vpop.trf.xlu0
        %v1199 = vpop.trf.xlu0
        %v1200 = vpop.trf.xlu0
        %v1201 = vpop.trf.xlu0
        %v1202 = vpop.trf.xlu0
        %vm1203 = vcmask 130048
        %v1205 = vsel %vm1203, %v1195, 0
        %v1208 = vsel %vm1203, %v1196, 0
        %v1211 = vsel %vm1203, %v1197, 0
        %v1214 = vsel %vm1203, %v1198, 0
        %v1217 = vsel %vm1203, %v1199, 0
        %v1220 = vsel %vm1203, %v1200, 0
        %v1223 = vsel %vm1203, %v1201, 0
        %v1226 = vsel %vm1203, %v1202, 0
        %1228 = vmatprep.subr.bf16.mxu0 0
        %1229 = vmatpush1.bf16.msra.mxu0 0
        %1230 = vmatprep.subr.bf16.mxu0 0
        %1231 = vmatpush1.bf16.msra.mxu0 0
        %1232 = vmatprep.subr.bf16.mxu0 0
        %1233 = vmatpush1.bf16.msra.mxu0 0
        %1234 = vmatprep.subr.bf16.mxu0 0
        %1235 = vmatpush1.bf16.msra.mxu0 0
        %1236 = vmatprep.subr.bf16.mxu0 0
        %1237 = vmatpush1.bf16.msra.mxu0 0
        %1238 = vmatprep.subr.bf16.mxu0 0
        %1239 = vmatpush1.bf16.msra.mxu0 0
        %1240 = vmatprep.subr.bf16.mxu0 0
        %1241 = vmatpush1.bf16.msra.mxu0 0
        %1242 = vmatprep.subr.bf16.mxu0 0
        %1243 = vmatpush1.bf16.msra.mxu0 %v1186
        %1244 = vmatprep.subr.bf16.mxu0 0
        %1245 = vmatpush2.bf16.msra.mxu0 0
        %1246 = vmatprep.subr.bf16.mxu0 0
        %1247 = vmatpush2.bf16.msra.mxu0 0
        %1248 = vmatprep.subr.bf16.mxu0 0
        %1249 = vmatpush2.bf16.msra.mxu0 0
        %1250 = vmatprep.subr.bf16.mxu0 0
        %1251 = vmatpush2.bf16.msra.mxu0 0
        %1252 = vmatprep.subr.bf16.mxu0 0
        %1253 = vmatpush2.bf16.msra.mxu0 0
        %1254 = vmatprep.subr.bf16.mxu0 0
        %1255 = vmatpush2.bf16.msra.mxu0 0
        %1256 = vmatprep.subr.bf16.mxu0 0
        %1257 = vmatpush2.bf16.msra.mxu0 0
        %1258 = vmatprep.subr.bf16.mxu0 0
        %1259 = vmatpush2.bf16.msra.mxu0 0
        %1260 = vmatprep.mubr.bf16.mxu0 0
        %1261 = vmatmul.mubr.bf16.gmra.mxu0 %v1205
        %v1262 = vpop.f32.mrf.mxu0
        %v1263 = vadd.f32 0.0, %v1262
        %v1264 = vpop.f32.mrf.mxu0
        %v1265 = vpop.f32.mrf.mxu0
        %v1266 = vadd.f32 0.0, %v1265
        %v1267 = vpop.f32.mrf.mxu0
        %1268 = vmatprep.mubr.bf16.mxu0 0
        %1269 = vmatmul.mubr.bf16.gmra.mxu0 %v1208
        %v1270 = vpop.f32.mrf.mxu0
        %v1271 = vadd.f32 0.0, %v1270
        %v1272 = vpop.f32.mrf.mxu0
        %v1273 = vpop.f32.mrf.mxu0
        %v1274 = vadd.f32 0.0, %v1273
        %v1275 = vpop.f32.mrf.mxu0
        %1276 = vmatprep.mubr.bf16.mxu0 0
        %1277 = vmatmul.mubr.bf16.gmra.mxu0 %v1211
        %v1278 = vpop.f32.mrf.mxu0
        %v1279 = vadd.f32 0.0, %v1278
        %v1280 = vpop.f32.mrf.mxu0
        %v1281 = vpop.f32.mrf.mxu0
        %v1282 = vadd.f32 0.0, %v1281
        %v1283 = vpop.f32.mrf.mxu0
        %1284 = vmatprep.mubr.bf16.mxu0 0
        %1285 = vmatmul.mubr.bf16.gmra.mxu0 %v1214
        %v1286 = vpop.f32.mrf.mxu0
        %v1287 = vadd.f32 0.0, %v1286
        %v1288 = vpop.f32.mrf.mxu0
        %v1289 = vpop.f32.mrf.mxu0
        %v1290 = vadd.f32 0.0, %v1289
        %v1291 = vpop.f32.mrf.mxu0
        %1292 = vmatprep.mubr.bf16.mxu0 0
        %1293 = vmatmul.mubr.bf16.gmra.mxu0 %v1217
        %v1294 = vpop.f32.mrf.mxu0
        %v1295 = vadd.f32 0.0, %v1294
        %v1296 = vpop.f32.mrf.mxu0
        %v1297 = vpop.f32.mrf.mxu0
        %v1298 = vadd.f32 0.0, %v1297
        %v1299 = vpop.f32.mrf.mxu0
        %1300 = vmatprep.mubr.bf16.mxu0 0
        %1301 = vmatmul.mubr.bf16.gmra.mxu0 %v1220
        %v1302 = vpop.f32.mrf.mxu0
        %v1303 = vadd.f32 0.0, %v1302
        %v1304 = vpop.f32.mrf.mxu0
        %v1305 = vpop.f32.mrf.mxu0
        %v1306 = vadd.f32 0.0, %v1305
        %v1307 = vpop.f32.mrf.mxu0
        %1308 = vmatprep.mubr.bf16.mxu0 0
        %1309 = vmatmul.mubr.bf16.gmra.mxu0 %v1223
        %v1310 = vpop.f32.mrf.mxu0
        %v1311 = vadd.f32 0.0, %v1310
        %v1312 = vpop.f32.mrf.mxu0
        %v1313 = vpop.f32.mrf.mxu0
        %v1314 = vadd.f32 0.0, %v1313
        %v1315 = vpop.f32.mrf.mxu0
        %1316 = vmatprep.mubr.bf16.mxu0 0
        %1317 = vmatmul.mubr.bf16.gmra.mxu0 %v1226
        %v1318 = vpop.f32.mrf.mxu0
        %v1319 = vadd.f32 0.0, %v1318
        %v1320 = vpop.f32.mrf.mxu0
        %v1321 = vpop.f32.mrf.mxu0
        %v1322 = vadd.f32 0.0, %v1321
        %v1323 = vpop.f32.mrf.mxu0
        %1324 = vdwg.mxu0
        %v1325 = vadd.f32 %v1170, %v1263
        %v1326 = vadd.f32 %v1171, %v1266
        %v1327 = vadd.f32 %v1172, %v1271
        %v1328 = vadd.f32 %v1173, %v1274
        %v1329 = vadd.f32 %v1174, %v1279
        %v1330 = vadd.f32 %v1175, %v1282
        %v1331 = vadd.f32 %v1176, %v1287
        %v1332 = vadd.f32 %v1177, %v1290
        %v1333 = vadd.f32 %v1178, %v1295
        %v1334 = vadd.f32 %v1179, %v1298
        %v1335 = vadd.f32 %v1180, %v1303
        %v1336 = vadd.f32 %v1181, %v1306
        %v1337 = vadd.f32 %v1182, %v1311
        %v1338 = vadd.f32 %v1183, %v1314
        %v1339 = vadd.f32 %v1184, %v1319
        %v1340 = vadd.f32 %v1185, %v1322
        %1341 = vst [vmem:[#allocation2] sm:$0xff] %v1325
        %1342 = vst [vmem:[#allocation2 + $0x8] sm:$0xff] %v1326
        %1343 = vst [vmem:[#allocation2 + $0x10] sm:$0xff] %v1327
        %1344 = vst [vmem:[#allocation2 + $0x18] sm:$0xff] %v1328
        %1345 = vst [vmem:[#allocation2 + $0x20] sm:$0xff] %v1329
        %1346 = vst [vmem:[#allocation2 + $0x28] sm:$0xff] %v1330
        %1347 = vst [vmem:[#allocation2 + $0x30] sm:$0xff] %v1331
        %1348 = vst [vmem:[#allocation2 + $0x38] sm:$0xff] %v1332
        %1349 = vst [vmem:[#allocation2 + $0x40] sm:$0xff] %v1333
        %1350 = vst [vmem:[#allocation2 + $0x48] sm:$0xff] %v1334
        %1351 = vst [vmem:[#allocation2 + $0x50] sm:$0xff] %v1335
        %1352 = vst [vmem:[#allocation2 + $0x58] sm:$0xff] %v1336
        %1353 = vst [vmem:[#allocation2 + $0x60] sm:$0xff] %v1337
        %1354 = vst [vmem:[#allocation2 + $0x68] sm:$0xff] %v1338
        %1355 = vst [vmem:[#allocation2 + $0x70] sm:$0xff] %v1339
        %1356 = vst [vmem:[#allocation2 + $0x78] sm:$0xff] %v1340
      $region72: #{unigcn_forward.1} parent=51 // pred_fallthru
        _
      %p1357 = scmp.eq.s32.totalorder %s23, 2
      // Predicated region
      $region73: #{unigcn_forward.1} parent=51 // pred_check
        %p1358 = pneg %p1357
      $region74: #{unigcn_forward.1} parent=51 // pred_check_branch
        %1360 = sbr.rel (%p1358) target = $region76
      $region75: #{unigcn_forward.1} parent=51 // pred_region
        %v1361 = vld [vmem:[#allocation3] sm:$0xf]
        %v1362 = vld [vmem:[#allocation3 + $0x4] sm:$0xf]
        %v1363 = vld [vmem:[#allocation3 + $0x8] sm:$0xf]
        %v1364 = vld [vmem:[#allocation3 + $0xc] sm:$0xf]
        %v1365 = vld [vmem:[#allocation3 + $0x10] sm:$0xf]
        %v1366 = vld [vmem:[#allocation3 + $0x14] sm:$0xf]
        %v1367 = vld [vmem:[#allocation3 + $0x18] sm:$0xf]
        %v1368 = vld [vmem:[#allocation3 + $0x1c] sm:$0xf]
        %v1369 = vld [vmem:[#allocation3 + $0x20] sm:$0xf]
        %v1370 = vld [vmem:[#allocation3 + $0x24] sm:$0xf]
        %v1371 = vld [vmem:[#allocation3 + $0x28] sm:$0xf]
        %v1372 = vld [vmem:[#allocation3 + $0x2c] sm:$0xf]
        %v1373 = vld [vmem:[#allocation3 + $0x30] sm:$0xf]
        %v1374 = vld [vmem:[#allocation3 + $0x34] sm:$0xf]
        %v1375 = vld [vmem:[#allocation3 + $0x38] sm:$0xf]
        %v1376 = vld [vmem:[#allocation3 + $0x3c] sm:$0xf]
        %v1379 = vunpack.c.l.b16 %v601
        %v1380 = vunpack.c.l.b16 %v602
        %v1381 = vpack.c.b16 %v1380, %v1379
        %v1399 = vunpack.c.l.b16 %v1361
        %v1400 = vunpack.c.l.b16 %v1362
        %v1401 = vunpack.c.l.b16 %v1363
        %v1402 = vunpack.c.l.b16 %v1364
        %v1403 = vunpack.c.l.b16 %v1365
        %v1404 = vunpack.c.l.b16 %v1366
        %v1405 = vunpack.c.l.b16 %v1367
        %v1406 = vunpack.c.l.b16 %v1368
        %v1407 = vunpack.c.l.b16 %v1369
        %v1408 = vunpack.c.l.b16 %v1370
        %v1409 = vunpack.c.l.b16 %v1371
        %v1410 = vunpack.c.l.b16 %v1372
        %v1411 = vunpack.c.l.b16 %v1373
        %v1412 = vunpack.c.l.b16 %v1374
        %v1413 = vunpack.c.l.b16 %v1375
        %v1414 = vunpack.c.l.b16 %v1376
        %v1415 = vpack.c.b16 %v1400, %v1399
        %v1416 = vpack.c.b16 %v1402, %v1401
        %v1417 = vpack.c.b16 %v1404, %v1403
        %v1418 = vpack.c.b16 %v1406, %v1405
        %v1419 = vpack.c.b16 %v1408, %v1407
        %v1420 = vpack.c.b16 %v1410, %v1409
        %v1421 = vpack.c.b16 %v1412, %v1411
        %v1422 = vpack.c.b16 %v1414, %v1413
        %1431 = vmatprep.subr.bf16.mxu0 0
        %1432 = vmatpush1.bf16.msra.mxu0 %v1422
        %1433 = vmatprep.subr.bf16.mxu0 0
        %1434 = vmatpush1.bf16.msra.mxu0 %v1421
        %1435 = vmatprep.subr.bf16.mxu0 0
        %1436 = vmatpush1.bf16.msra.mxu0 %v1420
        %1437 = vmatprep.subr.bf16.mxu0 0
        %1438 = vmatpush1.bf16.msra.mxu0 %v1419
        %1439 = vmatprep.subr.bf16.mxu0 0
        %1440 = vmatpush1.bf16.msra.mxu0 %v1418
        %1441 = vmatprep.subr.bf16.mxu0 0
        %1442 = vmatpush1.bf16.msra.mxu0 %v1417
        %1443 = vmatprep.subr.bf16.mxu0 0
        %1444 = vmatpush1.bf16.msra.mxu0 %v1416
        %1445 = vmatprep.subr.bf16.mxu0 0
        %1446 = vmatpush1.bf16.msra.mxu0 %v1415
        %1447 = vmatprep.subr.bf16.mxu0 0
        %1448 = vmatpush2.bf16.msra.mxu0 0
        %1449 = vmatprep.subr.bf16.mxu0 0
        %1450 = vmatpush2.bf16.msra.mxu0 0
        %1451 = vmatprep.subr.bf16.mxu0 0
        %1452 = vmatpush2.bf16.msra.mxu0 0
        %1453 = vmatprep.subr.bf16.mxu0 0
        %1454 = vmatpush2.bf16.msra.mxu0 0
        %1455 = vmatprep.subr.bf16.mxu0 0
        %1456 = vmatpush2.bf16.msra.mxu0 0
        %1457 = vmatprep.subr.bf16.mxu0 0
        %1458 = vmatpush2.bf16.msra.mxu0 0
        %1459 = vmatprep.subr.bf16.mxu0 0
        %1460 = vmatpush2.bf16.msra.mxu0 0
        %1461 = vmatprep.subr.bf16.mxu0 0
        %1462 = vmatpush2.bf16.msra.mxu0 0
        %1463 = vmatprep.mubr.bf16.mxu0 0
        %1464 = vmatmul.mubr.bf16.gmra.mxu0 %v1381
        %v1465 = vpop.f32.mrf.mxu0
        %v1466 = vadd.f32 0.0, %v1465
        %v1467 = vpop.f32.mrf.mxu0
        %v1468 = vpop.f32.mrf.mxu0
        %v1469 = vadd.f32 0.0, %v1468
        %v1470 = vpop.f32.mrf.mxu0
        %1471 = vdwg.mxu0
        %v1472 = vld [vmem:[%s357] sm:$0xff]
        %v1473 = vld [vmem:[%s357 + $0x8] sm:$0xff]
        %1475 = vset.pattern.permute.xlu0 0
        %1476 = vperm.xlu0 %1475, %v1472
        %v1477 = vpop.permute.xlu0 %1476
        %1480 = vset.pattern.permute.xlu0 0
        %1481 = vperm.xlu0 %1480, %v1473
        %v1482 = vpop.permute.xlu0 %1481
        %v1484 = vmul.f32 %v1466, %v1477
        %v1485 = vmul.f32 %v1469, %v1482
        %1486 = vst [vmem:[%s363] sm:$0xff] %v1484
        %1487 = vst [vmem:[%s363 + $0x8] sm:$0xff] %v1485
      $region76: #{unigcn_forward.1} parent=51 // pred_fallthru
        _
      %s1488 = smul.u32 2, %s24
      %p1489 = scmp.lt.s32.totalorder %s1488, 1
      %s1490 = scalar_select %p1489, %s1488, 1
      %s1491 = smul.addr %s1490, 8
      %s1492 = scalar_lea.vmem %s8, %s1491
      // Predicated region
      $region77: #{unigcn_forward.1} parent=51 // pred_check
        %p1493 = pneg %p232
      $region78: #{unigcn_forward.1} parent=51 // pred_check_branch
        %1495 = sbr.rel (%p1493) target = $region80
      $region79: #{unigcn_forward.1} parent=51 // pred_region
        %s1496 = smul.u32 2, %s24
      $region80: #{unigcn_forward.1} parent=51 // pred_fallthru
        _
      // Predicated region
      $region81: #{unigcn_forward.1} parent=51 // pred_check
        %p1497 = pneg %p232
      $region82: #{unigcn_forward.1} parent=51 // pred_check_branch
        %1499 = sbr.rel (%p1497) target = $region84
      $region83: #{unigcn_forward.1} parent=51 // pred_region
        %s1500 = smul.u32 2, %s24
        %p1501 = scmp.lt.s32.totalorder %s1500, 1
        %s1502 = scalar_select %p1501, %s1500, 1
        %s1503 = smul.addr %s1502, 8
        %s1504 = scalar_lea.vmem %s8, %s1503
      $region84: #{unigcn_forward.1} parent=51 // pred_fallthru
        _
    $region52: #{unigcn_forward.1} parent=5 // pred_fallthru
      _
    %p1505 = scmp.le.s32.totalorder 2, %s14
    // Predicated region
    $region85: #{unigcn_forward.1} parent=5 // pred_check
      %p1506 = pneg %p1505
    $region86: #{unigcn_forward.1} parent=5 // pred_check_branch
      %1508 = sbr.rel (%p1506) target = $region88
    $region87: #{unigcn_forward.1} parent=5 // pred_region
      %s1509 = ssub.s32 %s14, 2
    $region88: #{unigcn_forward.1} parent=5 // pred_fallthru
      _
  $region6: #{unigcn_forward.1} parent=0 // loop_footer
    %s18 = sadd.s32 1, %s14
  $region7: #{unigcn_forward.1} parent=0 // loop_footer_branch
    %13 = sbr.rel target = $region3
  $region8: #{unigcn_forward.1} parent=0 // loop_exit
    _

</llo_original>
